<compile_context>
chip_gen: v7x
topology: tpu7x:2x2x1
jax: 0.10.0
libtpu: 0.0.40
codegen_flags: <defaults>
</compile_context>

<pallas_src>
import jax
import jax.numpy as jnp
from jax.experimental import pallas as pl
from jax.experimental.pallas import tpu as pltpu

_LANE = 128  # TPU lane width


def _mlp3_kernel(x_ref, w1_ref, b1_ref, w2_ref, b2_ref, w3_ref, b3_ref, o_ref):
    """Fused 3-layer MLP on one row-tile. Matmuls in (bf16|f32)->f32, epilogue f32."""
    # Layer 1
    h = jnp.dot(x_ref[...], w1_ref[...], preferred_element_type=jnp.float32)
    h = jnp.maximum(h + b1_ref[...], 0.0)
    # Layer 2 (cast activations back to the matmul operand dtype for the MXU)
    h = jnp.dot(h.astype(w2_ref.dtype), w2_ref[...],
                preferred_element_type=jnp.float32)
    h = jnp.maximum(h + b2_ref[...], 0.0)
    # Layer 3 (no activation)
    out = jnp.dot(h.astype(w3_ref.dtype), w3_ref[...],
                  preferred_element_type=jnp.float32)
    o_ref[...] = (out + b3_ref[...]).astype(o_ref.dtype)


def _round_up(v, m):
    return (v + m - 1) // m * m


def _pad_params(params, hidden_pad, out_pad, compute_dtype):
    """Zero-pad hidden/out dims to lane multiples. Zero padding is exact:
    padded hidden units get 0 pre-activation (ReLU -> 0) and padded W3 rows/cols
    contribute nothing; padded output columns are sliced off in the wrapper."""
    w1, b1, w2, b2, w3, b3 = params

    def pad2(a, rows, cols):
        return jnp.pad(a, ((0, rows - a.shape[0]), (0, cols - a.shape[1])))

    in_ch = w1.shape[0]
    w1p = pad2(w1, in_ch, hidden_pad).astype(compute_dtype)
    w2p = pad2(w2, hidden_pad, hidden_pad).astype(compute_dtype)
    w3p = pad2(w3, hidden_pad, out_pad).astype(compute_dtype)
    b1p = pad2(b1.reshape(1, -1), 1, hidden_pad).astype(jnp.float32)
    b2p = pad2(b2.reshape(1, -1), 1, hidden_pad).astype(jnp.float32)
    b3p = pad2(b3.reshape(1, -1), 1, out_pad).astype(jnp.float32)
    return w1p, b1p, w2p, b2p, w3p, b3p


def _forward_impl(x, params, *, tile_m, use_bf16, weight_buffers):
    n, in_ch = x.shape
    hidden = params[0].shape[1]
    out_ch = params[4].shape[1]

    compute_dtype = jnp.bfloat16 if use_bf16 else x.dtype
    hidden_pad = _round_up(hidden, _LANE)
    out_pad = _round_up(out_ch, _LANE)

    # Row tiling: big tiles (default 512) to amortize per-step pipeline overhead;
    # shrink to the (8-aligned) row count for small N so we don't over-pad.
    tile = min(tile_m, _round_up(n, 8))
    n_pad = _round_up(n, tile)

    x_pad = x if n_pad == n else jnp.pad(x, ((0, n_pad - n), (0, 0)))
    x_pad = x_pad.astype(compute_dtype)

    w1, b1, w2, b2, w3, b3 = _pad_params(params, hidden_pad, out_pad, compute_dtype)

    grid = (n_pad // tile,)

    weight_mode = pl.Buffered(weight_buffers) if weight_buffers != 2 else None

    def const_spec(shape):
        # Constant index_map: operand is resident across all grid steps.
        if weight_mode is None:
            return pl.BlockSpec(shape, lambda i: (0,) * len(shape))
        return pl.BlockSpec(shape, lambda i: (0,) * len(shape),
                            pipeline_mode=weight_mode)

    in_specs = [
        pl.BlockSpec((tile, in_ch), lambda i: (i, 0)),   # x row-tile
        const_spec((in_ch, hidden_pad)),                 # W1
        const_spec((1, hidden_pad)),                     # b1
        const_spec((hidden_pad, hidden_pad)),            # W2
        const_spec((1, hidden_pad)),                     # b2
        const_spec((hidden_pad, out_pad)),               # W3
        const_spec((1, out_pad)),                        # b3
    ]
    # Lane-dense output (out_pad is a multiple of 128 -> unmasked vst).
    out_specs = pl.BlockSpec((tile, out_pad), lambda i: (i, 0))

    flops = 2 * n_pad * (in_ch * hidden_pad
                         + hidden_pad * hidden_pad
                         + hidden_pad * out_pad)
    bytes_accessed = int(
        x_pad.size * x_pad.dtype.itemsize
        + sum(a.size * a.dtype.itemsize for a in (w1, b1, w2, b2, w3, b3))
        + n_pad * out_pad * jnp.dtype(x.dtype).itemsize)

    out_full = pl.pallas_call(
        _mlp3_kernel,
        out_shape=jax.ShapeDtypeStruct((n_pad, out_pad), x.dtype),
        grid_spec=pltpu.PrefetchScalarGridSpec(
            num_scalar_prefetch=0,
            grid=grid,
            in_specs=in_specs,
            out_specs=out_specs,
        ),
        compiler_params=pltpu.CompilerParams(
            # Row-tile axis is independent -> megacore-shardable (2 TCs on v7x).
            dimension_semantics=("parallel",)),
        cost_estimate=pl.CostEstimate(
            flops=flops, transcendentals=0, bytes_accessed=bytes_accessed),
    )(x_pad, w1, b1, w2, b2, w3, b3)

    return out_full[:n, :out_ch]


def discriminator_forward(x, params, *, tile_m=512, use_bf16=True):
    """3-layer MLP discriminator forward. x: (N, in_channels)."""
    try:
        # Single-buffer the resident weights/biases (constant index_maps).
        return _forward_impl(x, params, tile_m=tile_m, use_bf16=use_bf16,
                             weight_buffers=1)
    except Exception:
        # Fall back to default double-buffered pipeline if pl.Buffered(1) is
        # not supported by this JAX version (weights are tiny here anyway).
        return _forward_impl(x, params, tile_m=tile_m, use_bf16=use_bf16,
                             weight_buffers=2)


def init_params(key, in_channels, hidden_channels, out_channels):
    """Deterministic synthetic params (shapes match torch.nn.Linear layers)."""
    k1, k2, k3, k4, k5, k6 = jax.random.split(key, 6)

    def u(k, shape, fan_in):
        bound = 1.0 / jnp.sqrt(fan_in)
        return jax.random.uniform(k, shape, jnp.float32, -bound, bound)

    w1 = u(k1, (in_channels, hidden_channels), in_channels)
    b1 = u(k2, (1, hidden_channels), in_channels)
    w2 = u(k3, (hidden_channels, hidden_channels), hidden_channels)
    b2 = u(k4, (1, hidden_channels), hidden_channels)
    w3 = u(k5, (hidden_channels, out_channels), hidden_channels)
    b3 = u(k6, (1, out_channels), hidden_channels)
    return (w1, b1, w2, b2, w3, b3)


def reference_forward(x, params):
    """Pure-f32 reference."""
    w1, b1, w2, b2, w3, b3 = params
    h = jnp.maximum(x @ w1 + b1, 0.0)
    h = jnp.maximum(h @ w2 + b2, 0.0)
    return h @ w3 + b3


def reference_forward_matched(x, params, compute_dtype=jnp.bfloat16):
    """Reference matching the kernel's precision (bf16 operands, f32 accum)."""
    w1, b1, w2, b2, w3, b3 = params

    def dot(a, w):
        return jnp.dot(a.astype(compute_dtype), w.astype(compute_dtype),
                       preferred_element_type=jnp.float32)

    h = jnp.maximum(dot(x, w1) + b1, 0.0)
    h = jnp.maximum(dot(h, w2) + b2, 0.0)
    return dot(h, w3) + b3


if __name__ == "__main__":
    # Shapes consistent with the ARGVA discriminator:
    #   in_channels = latent dim = 32, hidden = 64, out = 32, N = 128 nodes.
    N, IN_CH, HIDDEN, OUT_CH = 128, 32, 64, 32

    key = jax.random.PRNGKey(0)
    kx, kp = jax.random.split(key)
    x = jax.random.normal(kx, (N, IN_CH), dtype=jnp.float32)
    params = init_params(kp, IN_CH, HIDDEN, OUT_CH)

    out = discriminator_forward(x, params)
    out = jax.block_until_ready(out)
    assert out.shape == (N, OUT_CH)

    ref_matched = reference_forward_matched(x, params)
    ref_f32 = reference_forward(x, params)
    assert jnp.allclose(out, ref_matched, atol=1e-3, rtol=1e-3), \
        "mismatch vs precision-matched reference"
    assert jnp.allclose(out, ref_f32, atol=5e-2, rtol=5e-2), \
        "mismatch vs f32 reference"

    # Ragged node count (exercises the pad-to-tile path; no divisibility assert).
    x2 = jax.random.normal(kx, (77, IN_CH), dtype=jnp.float32)
    out2 = jax.block_until_ready(discriminator_forward(x2, params))
    assert out2.shape == (77, OUT_CH)
    assert jnp.allclose(out2, reference_forward_matched(x2, params),
                        atol=1e-3, rtol=1e-3), "ragged-N mismatch"

    print("KERNEL_OK")
</pallas_src>

<mosaic_0001>
module attributes {stable_mosaic.version = 11 : i64} {
  func.func @_mlp3_kernel(%arg0: i32, %arg1: memref<128x32xbf16, #tpu.memory_space<vmem>>, %arg2: memref<32x128xbf16, #tpu.memory_space<vmem>>, %arg3: memref<1x128xf32, #tpu.memory_space<vmem>>, %arg4: memref<128x128xbf16, #tpu.memory_space<vmem>>, %arg5: memref<1x128xf32, #tpu.memory_space<vmem>>, %arg6: memref<128x128xbf16, #tpu.memory_space<vmem>>, %arg7: memref<1x128xf32, #tpu.memory_space<vmem>>, %arg8: memref<128x128xf32, #tpu.memory_space<vmem>>) attributes {dimension_semantics = [#tpu.dimension_semantics<parallel>], iteration_bounds = array<i64: 1>, scalar_prefetch = 0 : i64, scratch_operands = 0 : i64, tpu.core_type = #tpu.core_type<tc>, window_params = [{transform_indices = @transform_0, window_bounds = array<i64: 128, 32>}, {pipeline_mode = #tpu.pipeline_mode<synchronous>, transform_indices = @transform_1, window_bounds = array<i64: 32, 128>}, {pipeline_mode = #tpu.pipeline_mode<synchronous>, transform_indices = @transform_2, window_bounds = array<i64: 1, 128>}, {pipeline_mode = #tpu.pipeline_mode<synchronous>, transform_indices = @transform_3, window_bounds = array<i64: 128, 128>}, {pipeline_mode = #tpu.pipeline_mode<synchronous>, transform_indices = @transform_4, window_bounds = array<i64: 1, 128>}, {pipeline_mode = #tpu.pipeline_mode<synchronous>, transform_indices = @transform_5, window_bounds = array<i64: 128, 128>}, {pipeline_mode = #tpu.pipeline_mode<synchronous>, transform_indices = @transform_6, window_bounds = array<i64: 1, 128>}, {transform_indices = @transform_7, window_bounds = array<i64: 128, 128>}]} {
    %c0 = arith.constant 0 : index
    %c0_0 = arith.constant 0 : index
    %0 = vector.load %arg1[%c0, %c0_0] : memref<128x32xbf16, #tpu.memory_space<vmem>>, vector<128x32xbf16>
    %c0_1 = arith.constant 0 : index
    %c0_2 = arith.constant 0 : index
    %1 = vector.load %arg2[%c0_1, %c0_2] : memref<32x128xbf16, #tpu.memory_space<vmem>>, vector<32x128xbf16>
    %cst = arith.constant dense<0.000000e+00> : vector<128x128xf32>
    %2 = tpu.matmul %0, %1, %cst {dimension_numbers = #tpu.dot_dimension_numbers<[1], [0], [0], [1], [0, 0, 1, 1], [], []>} : vector<128x32xbf16>, vector<32x128xbf16>, vector<128x128xf32> -> vector<128x128xf32>
    %c0_3 = arith.constant 0 : index
    %c0_4 = arith.constant 0 : index
    %3 = vector.load %arg3[%c0_3, %c0_4] : memref<1x128xf32, #tpu.memory_space<vmem>>, vector<1x128xf32>
    %4 = vector.broadcast %3 : vector<1x128xf32> to vector<128x128xf32>
    %5 = arith.addf %2, %4 : vector<128x128xf32>
    %cst_5 = arith.constant 0.000000e+00 : f32
    %6 = vector.broadcast %cst_5 : f32 to vector<128x128xf32>
    %7 = arith.maximumf %5, %6 : vector<128x128xf32>
    %8 = arith.truncf %7 : vector<128x128xf32> to vector<128x128xbf16>
    %c0_6 = arith.constant 0 : index
    %c0_7 = arith.constant 0 : index
    %9 = vector.load %arg4[%c0_6, %c0_7] : memref<128x128xbf16, #tpu.memory_space<vmem>>, vector<128x128xbf16>
    %cst_8 = arith.constant dense<0.000000e+00> : vector<128x128xf32>
    %10 = tpu.matmul %8, %9, %cst_8 {dimension_numbers = #tpu.dot_dimension_numbers<[1], [0], [0], [1], [0, 0, 1, 1], [], []>} : vector<128x128xbf16>, vector<128x128xbf16>, vector<128x128xf32> -> vector<128x128xf32>
    %c0_9 = arith.constant 0 : index
    %c0_10 = arith.constant 0 : index
    %11 = vector.load %arg5[%c0_9, %c0_10] : memref<1x128xf32, #tpu.memory_space<vmem>>, vector<1x128xf32>
    %12 = vector.broadcast %11 : vector<1x128xf32> to vector<128x128xf32>
    %13 = arith.addf %10, %12 : vector<128x128xf32>
    %cst_11 = arith.constant 0.000000e+00 : f32
    %14 = vector.broadcast %cst_11 : f32 to vector<128x128xf32>
    %15 = arith.maximumf %13, %14 : vector<128x128xf32>
    %16 = arith.truncf %15 : vector<128x128xf32> to vector<128x128xbf16>
    %c0_12 = arith.constant 0 : index
    %c0_13 = arith.constant 0 : index
    %17 = vector.load %arg6[%c0_12, %c0_13] : memref<128x128xbf16, #tpu.memory_space<vmem>>, vector<128x128xbf16>
    %cst_14 = arith.constant dense<0.000000e+00> : vector<128x128xf32>
    %18 = tpu.matmul %16, %17, %cst_14 {dimension_numbers = #tpu.dot_dimension_numbers<[1], [0], [0], [1], [0, 0, 1, 1], [], []>} : vector<128x128xbf16>, vector<128x128xbf16>, vector<128x128xf32> -> vector<128x128xf32>
    %c0_15 = arith.constant 0 : index
    %c0_16 = arith.constant 0 : index
    %19 = vector.load %arg7[%c0_15, %c0_16] : memref<1x128xf32, #tpu.memory_space<vmem>>, vector<1x128xf32>
    %20 = vector.broadcast %19 : vector<1x128xf32> to vector<128x128xf32>
    %21 = arith.addf %18, %20 : vector<128x128xf32>
    %c0_17 = arith.constant 0 : index
    %c0_18 = arith.constant 0 : index
    %22 = vector.load %arg8[%c0_17, %c0_18] : memref<128x128xf32, #tpu.memory_space<vmem>>, vector<128x128xf32>
    tpu.vector_store %arg8[%c0_17, %c0_18], %21 {strides = array<i32>} : memref<128x128xf32, #tpu.memory_space<vmem>>, vector<128x128xf32>,
    return
  }
  func.func @transform_0(%arg0: i32) -> (i32, i32) {
    %c0_i32 = arith.constant 0 : i32
    %c0_i32_0 = arith.constant 0 : i32
    return %arg0, %c0_i32 : i32, i32
  }
  func.func @transform_1(%arg0: i32) -> (i32, i32) {
    %c0_i32 = arith.constant 0 : i32
    %c0_i32_0 = arith.constant 0 : i32
    %c0_i32_1 = arith.constant 0 : i32
    return %c0_i32, %c0_i32_0 : i32, i32
  }
  func.func @transform_2(%arg0: i32) -> (i32, i32) {
    %c0_i32 = arith.constant 0 : i32
    %c0_i32_0 = arith.constant 0 : i32
    %c0_i32_1 = arith.constant 0 : i32
    return %c0_i32, %c0_i32_0 : i32, i32
  }
  func.func @transform_3(%arg0: i32) -> (i32, i32) {
    %c0_i32 = arith.constant 0 : i32
    %c0_i32_0 = arith.constant 0 : i32
    %c0_i32_1 = arith.constant 0 : i32
    return %c0_i32, %c0_i32_0 : i32, i32
  }
  func.func @transform_4(%arg0: i32) -> (i32, i32) {
    %c0_i32 = arith.constant 0 : i32
    %c0_i32_0 = arith.constant 0 : i32
    %c0_i32_1 = arith.constant 0 : i32
    return %c0_i32, %c0_i32_0 : i32, i32
  }
  func.func @transform_5(%arg0: i32) -> (i32, i32) {
    %c0_i32 = arith.constant 0 : i32
    %c0_i32_0 = arith.constant 0 : i32
    %c0_i32_1 = arith.constant 0 : i32
    return %c0_i32, %c0_i32_0 : i32, i32
  }
  func.func @transform_6(%arg0: i32) -> (i32, i32) {
    %c0_i32 = arith.constant 0 : i32
    %c0_i32_0 = arith.constant 0 : i32
    %c0_i32_1 = arith.constant 0 : i32
    return %c0_i32, %c0_i32_0 : i32, i32
  }
  func.func @transform_7(%arg0: i32) -> (i32, i32) {
    %c0_i32 = arith.constant 0 : i32
    %c0_i32_0 = arith.constant 0 : i32
    return %arg0, %c0_i32 : i32, i32
  }
}

module attributes {stable_mosaic.version = 11 : i64} {
  func.func @_mlp3_kernel(%arg0: i32, %arg1: memref<128x32xbf16, #tpu.memory_space<vmem>>, %arg2: memref<32x128xbf16, #tpu.memory_space<vmem>>, %arg3: memref<1x128xf32, #tpu.memory_space<vmem>>, %arg4: memref<128x128xbf16, #tpu.memory_space<vmem>>, %arg5: memref<1x128xf32, #tpu.memory_space<vmem>>, %arg6: memref<128x128xbf16, #tpu.memory_space<vmem>>, %arg7: memref<1x128xf32, #tpu.memory_space<vmem>>, %arg8: memref<128x128xf32, #tpu.memory_space<vmem>>) attributes {dimension_semantics = [#tpu.dimension_semantics<parallel>], iteration_bounds = array<i64: 1>, scalar_prefetch = 0 : i64, scratch_operands = 0 : i64, tpu.core_type = #tpu.core_type<tc>, window_params = [{transform_indices = @transform_0, window_bounds = array<i64: 128, 32>}, {pipeline_mode = #tpu.pipeline_mode<synchronous>, transform_indices = @transform_1, window_bounds = array<i64: 32, 128>}, {pipeline_mode = #tpu.pipeline_mode<synchronous>, transform_indices = @transform_2, window_bounds = array<i64: 1, 128>}, {pipeline_mode = #tpu.pipeline_mode<synchronous>, transform_indices = @transform_3, window_bounds = array<i64: 128, 128>}, {pipeline_mode = #tpu.pipeline_mode<synchronous>, transform_indices = @transform_4, window_bounds = array<i64: 1, 128>}, {pipeline_mode = #tpu.pipeline_mode<synchronous>, transform_indices = @transform_5, window_bounds = array<i64: 128, 128>}, {pipeline_mode = #tpu.pipeline_mode<synchronous>, transform_indices = @transform_6, window_bounds = array<i64: 1, 128>}, {transform_indices = @transform_7, window_bounds = array<i64: 128, 128>}]} {
    %c0 = arith.constant 0 : index
    %c0_0 = arith.constant 0 : index
    %0 = vector.load %arg1[%c0, %c0_0] : memref<128x32xbf16, #tpu.memory_space<vmem>>, vector<128x32xbf16>
    %c0_1 = arith.constant 0 : index
    %c0_2 = arith.constant 0 : index
    %1 = vector.load %arg2[%c0_1, %c0_2] : memref<32x128xbf16, #tpu.memory_space<vmem>>, vector<32x128xbf16>
    %cst = arith.constant dense<0.000000e+00> : vector<128x128xf32>
    %2 = tpu.matmul %0, %1, %cst {dimension_numbers = #tpu.dot_dimension_numbers<[1], [0], [0], [1], [0, 0, 1, 1], [], []>} : vector<128x32xbf16>, vector<32x128xbf16>, vector<128x128xf32> -> vector<128x128xf32>
    %c0_3 = arith.constant 0 : index
    %c0_4 = arith.constant 0 : index
    %3 = vector.load %arg3[%c0_3, %c0_4] : memref<1x128xf32, #tpu.memory_space<vmem>>, vector<1x128xf32>
    %4 = vector.broadcast %3 : vector<1x128xf32> to vector<128x128xf32>
    %5 = arith.addf %2, %4 : vector<128x128xf32>
    %cst_5 = arith.constant 0.000000e+00 : f32
    %6 = vector.broadcast %cst_5 : f32 to vector<128x128xf32>
    %7 = arith.maximumf %5, %6 : vector<128x128xf32>
    %8 = arith.truncf %7 : vector<128x128xf32> to vector<128x128xbf16>
    %c0_6 = arith.constant 0 : index
    %c0_7 = arith.constant 0 : index
    %9 = vector.load %arg4[%c0_6, %c0_7] : memref<128x128xbf16, #tpu.memory_space<vmem>>, vector<128x128xbf16>
    %cst_8 = arith.constant dense<0.000000e+00> : vector<128x128xf32>
    %10 = tpu.matmul %8, %9, %cst_8 {dimension_numbers = #tpu.dot_dimension_numbers<[1], [0], [0], [1], [0, 0, 1, 1], [], []>} : vector<128x128xbf16>, vector<128x128xbf16>, vector<128x128xf32> -> vector<128x128xf32>
    %c0_9 = arith.constant 0 : index
    %c0_10 = arith.constant 0 : index
    %11 = vector.load %arg5[%c0_9, %c0_10] : memref<1x128xf32, #tpu.memory_space<vmem>>, vector<1x128xf32>
    %12 = vector.broadcast %11 : vector<1x128xf32> to vector<128x128xf32>
    %13 = arith.addf %10, %12 : vector<128x128xf32>
    %cst_11 = arith.constant 0.000000e+00 : f32
    %14 = vector.broadcast %cst_11 : f32 to vector<128x128xf32>
    %15 = arith.maximumf %13, %14 : vector<128x128xf32>
    %16 = arith.truncf %15 : vector<128x128xf32> to vector<128x128xbf16>
    %c0_12 = arith.constant 0 : index
    %c0_13 = arith.constant 0 : index
    %17 = vector.load %arg6[%c0_12, %c0_13] : memref<128x128xbf16, #tpu.memory_space<vmem>>, vector<128x128xbf16>
    %cst_14 = arith.constant dense<0.000000e+00> : vector<128x128xf32>
    %18 = tpu.matmul %16, %17, %cst_14 {dimension_numbers = #tpu.dot_dimension_numbers<[1], [0], [0], [1], [0, 0, 1, 1], [], []>} : vector<128x128xbf16>, vector<128x128xbf16>, vector<128x128xf32> -> vector<128x128xf32>
    %c0_15 = arith.constant 0 : index
    %c0_16 = arith.constant 0 : index
    %19 = vector.load %arg7[%c0_15, %c0_16] : memref<1x128xf32, #tpu.memory_space<vmem>>, vector<1x128xf32>
    %20 = vector.broadcast %19 : vector<1x128xf32> to vector<128x128xf32>
    %21 = arith.addf %18, %20 : vector<128x128xf32>
    %c0_17 = arith.constant 0 : index
    %c0_18 = arith.constant 0 : index
    %22 = vector.load %arg8[%c0_17, %c0_18] : memref<128x128xf32, #tpu.memory_space<vmem>>, vector<128x128xf32>
    tpu.vector_store %arg8[%c0_17, %c0_18], %21 {strides = array<i32>} : memref<128x128xf32, #tpu.memory_space<vmem>>, vector<128x128xf32>,
    return
  }
  func.func @transform_0(%arg0: i32) -> (i32, i32) {
    %c0_i32 = arith.constant 0 : i32
    %c0_i32_0 = arith.constant 0 : i32
    return %arg0, %c0_i32 : i32, i32
  }
  func.func @transform_1(%arg0: i32) -> (i32, i32) {
    %c0_i32 = arith.constant 0 : i32
    %c0_i32_0 = arith.constant 0 : i32
    %c0_i32_1 = arith.constant 0 : i32
    return %c0_i32, %c0_i32_0 : i32, i32
  }
  func.func @transform_2(%arg0: i32) -> (i32, i32) {
    %c0_i32 = arith.constant 0 : i32
    %c0_i32_0 = arith.constant 0 : i32
    %c0_i32_1 = arith.constant 0 : i32
    return %c0_i32, %c0_i32_0 : i32, i32
  }
  func.func @transform_3(%arg0: i32) -> (i32, i32) {
    %c0_i32 = arith.constant 0 : i32
    %c0_i32_0 = arith.constant 0 : i32
    %c0_i32_1 = arith.constant 0 : i32
    return %c0_i32, %c0_i32_0 : i32, i32
  }
  func.func @transform_4(%arg0: i32) -> (i32, i32) {
    %c0_i32 = arith.constant 0 : i32
    %c0_i32_0 = arith.constant 0 : i32
    %c0_i32_1 = arith.constant 0 : i32
    return %c0_i32, %c0_i32_0 : i32, i32
  }
  func.func @transform_5(%arg0: i32) -> (i32, i32) {
    %c0_i32 = arith.constant 0 : i32
    %c0_i32_0 = arith.constant 0 : i32
    %c0_i32_1 = arith.constant 0 : i32
    return %c0_i32, %c0_i32_0 : i32, i32
  }
  func.func @transform_6(%arg0: i32) -> (i32, i32) {
    %c0_i32 = arith.constant 0 : i32
    %c0_i32_0 = arith.constant 0 : i32
    %c0_i32_1 = arith.constant 0 : i32
    return %c0_i32, %c0_i32_0 : i32, i32
  }
  func.func @transform_7(%arg0: i32) -> (i32, i32) {
    %c0_i32 = arith.constant 0 : i32
    %c0_i32_0 = arith.constant 0 : i32
    return %arg0, %c0_i32 : i32, i32
  }
}

</mosaic_0001>

<llo_original>
// kernel: tpu_custom_call.1
$region0: #{tpu_custom_call.1}
  #allocation0 [shape = 'u32[]', space=smem, size = 0x4, offset = 0x4, fixed_abs, tag = 'smem constant byte address 0x4 - core index']
  #allocation1 [shape = 'u32[144,128]{1,0:T(1,128)}', space=vmem, size = 0x12000, scoped, tag = 'internal scratch']
  %s0 = inlined_call_operand.vmem [shape: bf16[128,32], index: 0, kind: input, shape index: {}]
  %s1 = inlined_call_operand.vmem [shape: bf16[32,128], index: 1, kind: input, shape index: {}]
  %s2 = inlined_call_operand.vmem [shape: f32[1,128], index: 2, kind: input, shape index: {}]
  %s3 = inlined_call_operand.vmem [shape: bf16[128,128], index: 3, kind: input, shape index: {}]
  %s4 = inlined_call_operand.vmem [shape: f32[1,128], index: 4, kind: input, shape index: {}]
  %s5 = inlined_call_operand.hbm [shape: bf16[128,128], index: 5, kind: input, shape index: {}]
  %s6 = inlined_call_operand.vmem [shape: f32[1,128], index: 6, kind: input, shape index: {}]
  %s7 = inlined_call_operand.hbm [shape: f32[128,128], index: 7, kind: output, shape index: {}]
  %s8 = sld [smem:[#allocation0]]
  $region42: #{tpu_custom_call.1} parent=0
    _
  %s10 = ssub.s32 1, %s8
  %s11 = scalar_select 0, %s10, %s8
  $region1: #{tpu_custom_call.1} parent=0
    #allocation2 [shape = 'u8[32768]{0}', space=vmem, size = 0x8000, scoped, tag = 'input window, operand 5, single buffered']
    #allocation3 [shape = 's32[1]{0}', space=sflag, size = 0x4, scoped, tag = 'scoped memory for tpu_custom_call.1']
    #allocation4 [shape = 's32[1]{0}', space=sflag, size = 0x4, scoped, tag = 'scoped memory for tpu_custom_call.1']
    #allocation5 [shape = 'u8[65536]{0}', space=vmem, size = 0x10000, scoped, tag = 'output window, operand 0, single buffered']
    %12 = vsyncpa [#allocation3], 0
    %13 = vsyncpa [#allocation4], 0
    // Predicated region
    $region2: #{tpu_custom_call.1} parent=1 // pred_check
      _
    $region3: #{tpu_custom_call.1} parent=1 // pred_check_branch
      %15 = sbr.rel (0) target = $region5
    $region4: #{tpu_custom_call.1} parent=1 // pred_region
      _
    $region5: #{tpu_custom_call.1} parent=1 // pred_fallthru
      _
    // Predicated region
    $region6: #{tpu_custom_call.1} parent=1 // pred_check
      _
    $region7: #{tpu_custom_call.1} parent=1 // pred_check_branch
      %17 = sbr.rel (0) target = $region9
    $region8: #{tpu_custom_call.1} parent=1 // pred_region
      _
    $region9: #{tpu_custom_call.1} parent=1 // pred_fallthru
      _
    // Predicated region
    $region10: #{tpu_custom_call.1} parent=1 // pred_check
      _
    $region11: #{tpu_custom_call.1} parent=1 // pred_check_branch
      %19 = sbr.rel (0) target = $region13
    $region12: #{tpu_custom_call.1} parent=1 // pred_region
      _
    $region13: #{tpu_custom_call.1} parent=1 // pred_fallthru
      _
    // Predicated region
    $region14: #{tpu_custom_call.1} parent=1 // pred_check
      _
    $region15: #{tpu_custom_call.1} parent=1 // pred_check_branch
      %21 = sbr.rel (0) target = $region17
    $region16: #{tpu_custom_call.1} parent=1 // pred_region
      _
    $region17: #{tpu_custom_call.1} parent=1 // pred_fallthru
      _
    // Predicated region
    $region18: #{tpu_custom_call.1} parent=1 // pred_check
      _
    $region19: #{tpu_custom_call.1} parent=1 // pred_check_branch
      %23 = sbr.rel (0) target = $region21
    $region20: #{tpu_custom_call.1} parent=1 // pred_region
      _
    $region21: #{tpu_custom_call.1} parent=1 // pred_fallthru
      _
    // Predicated region
    $region22: #{tpu_custom_call.1} parent=1 // pred_check
      _
    $region23: #{tpu_custom_call.1} parent=1 // pred_check_branch
      %25 = sbr.rel (0) target = $region25
    $region24: #{tpu_custom_call.1} parent=1 // pred_region
      %s27 = ssub.s32 1024, 1024
      %28 = vsyncadd [#allocation3], %s27
      %s29 = sshll.u32 [#allocation2], 4
      %s30 = int_to_ptr.vmem [resolvable:$true] %s29
      %35 = dma.hbm_to_vmem [thread:$0]  %s5, 1024, %s30, [#allocation3], 64, 64, 4
    $region25: #{tpu_custom_call.1} parent=1 // pred_fallthru
      _
    // Predicated region
    $region26: #{tpu_custom_call.1} parent=1 // pred_check
      _
    $region27: #{tpu_custom_call.1} parent=1 // pred_check_branch
      %37 = sbr.rel (0) target = $region29
    $region28: #{tpu_custom_call.1} parent=1 // pred_region
      _
    $region29: #{tpu_custom_call.1} parent=1 // pred_fallthru
      _
    // Predicated region
    $region30: #{tpu_custom_call.1} parent=1 // pred_check
      _
    $region31: #{tpu_custom_call.1} parent=1 // pred_check_branch
      %39 = sbr.rel (0) target = $region33
    $region32: #{tpu_custom_call.1} parent=1 // pred_region
      %40 = dma.done [#allocation3], 1024
    $region33: #{tpu_custom_call.1} parent=1 // pred_fallthru
      _
    %v42 = vld [vmem:[%s0] sm:$0xf]
    %v43 = vld [vmem:[%s0 + $0x4] sm:$0xf]
    %v44 = vld [vmem:[%s0 + $0x8] sm:$0xf]
    %v45 = vld [vmem:[%s0 + $0xc] sm:$0xf]
    %v46 = vld [vmem:[%s0 + $0x10] sm:$0xf]
    %v47 = vld [vmem:[%s0 + $0x14] sm:$0xf]
    %v48 = vld [vmem:[%s0 + $0x18] sm:$0xf]
    %v49 = vld [vmem:[%s0 + $0x1c] sm:$0xf]
    %v50 = vld [vmem:[%s0 + $0x20] sm:$0xf]
    %v51 = vld [vmem:[%s0 + $0x24] sm:$0xf]
    %v52 = vld [vmem:[%s0 + $0x28] sm:$0xf]
    %v53 = vld [vmem:[%s0 + $0x2c] sm:$0xf]
    %v54 = vld [vmem:[%s0 + $0x30] sm:$0xf]
    %v55 = vld [vmem:[%s0 + $0x34] sm:$0xf]
    %v56 = vld [vmem:[%s0 + $0x38] sm:$0xf]
    %v57 = vld [vmem:[%s0 + $0x3c] sm:$0xf]
    %v58 = vld [vmem:[%s1] sm:$0xf]
    %v59 = vld [vmem:[%s1 + $0x4] sm:$0xf]
    %v60 = vld [vmem:[%s1 + $0x8] sm:$0xf]
    %v61 = vld [vmem:[%s1 + $0xc] sm:$0xf]
    %v62 = vld [vmem:[%s2] sm:$0x1]
    %v64 = vlaneseq
    %v65 = vshrl.u32 %v64, 7
    %v66 = vsub.s32 0, %v65
    %v67 = vrot.slane %v62, %v66
    %v85 = vunpack.c.l.b16 %v42
    %v86 = vunpack.c.l.b16 %v43
    %v87 = vunpack.c.l.b16 %v44
    %v88 = vunpack.c.l.b16 %v45
    %v89 = vunpack.c.l.b16 %v46
    %v90 = vunpack.c.l.b16 %v47
    %v91 = vunpack.c.l.b16 %v48
    %v92 = vunpack.c.l.b16 %v49
    %v93 = vunpack.c.l.b16 %v50
    %v94 = vunpack.c.l.b16 %v51
    %v95 = vunpack.c.l.b16 %v52
    %v96 = vunpack.c.l.b16 %v53
    %v97 = vunpack.c.l.b16 %v54
    %v98 = vunpack.c.l.b16 %v55
    %v99 = vunpack.c.l.b16 %v56
    %v100 = vunpack.c.l.b16 %v57
    %v101 = vpack.c.b16 %v86, %v85
    %v102 = vpack.c.b16 %v88, %v87
    %v103 = vpack.c.b16 %v90, %v89
    %v104 = vpack.c.b16 %v92, %v91
    %v105 = vpack.c.b16 %v94, %v93
    %v106 = vpack.c.b16 %v96, %v95
    %v107 = vpack.c.b16 %v98, %v97
    %v108 = vpack.c.b16 %v100, %v99
    %v113 = vunpack.c.l.b16 %v58
    %v114 = vunpack.c.l.b16 %v59
    %v115 = vunpack.c.l.b16 %v60
    %v116 = vunpack.c.l.b16 %v61
    %v117 = vpack.c.b16 %v114, %v113
    %v118 = vpack.c.b16 %v116, %v115
    %vm121 = vcmask 261120
    %v123 = vsel %vm121, %v101, 0
    %v126 = vsel %vm121, %v102, 0
    %v129 = vsel %vm121, %v103, 0
    %v132 = vsel %vm121, %v104, 0
    %v135 = vsel %vm121, %v105, 0
    %v138 = vsel %vm121, %v106, 0
    %v141 = vsel %vm121, %v107, 0
    %v144 = vsel %vm121, %v108, 0
    %146 = vmatprep.subr.bf16.mxu0 0
    %147 = vmatpush1.bf16.msra.mxu0 %v117
    %148 = vmatprep.subr.bf16.mxu0 0
    %149 = vmatpush1.bf16.msra.mxu0 %v118
    %150 = vmatprep.subr.bf16.mxu0 0
    %151 = vmatpush1.bf16.msra.mxu0 0
    %152 = vmatprep.subr.bf16.mxu0 0
    %153 = vmatpush1.bf16.msra.mxu0 0
    %154 = vmatprep.subr.bf16.mxu0 0
    %155 = vmatpush1.bf16.msra.mxu0 0
    %156 = vmatprep.subr.bf16.mxu0 0
    %157 = vmatpush1.bf16.msra.mxu0 0
    %158 = vmatprep.subr.bf16.mxu0 0
    %159 = vmatpush1.bf16.msra.mxu0 0
    %160 = vmatprep.subr.bf16.mxu0 0
    %161 = vmatpush1.bf16.msra.mxu0 0
    %162 = vmatprep.subr.bf16.mxu0 0
    %163 = vmatpush1.bf16.msra.mxu0 0
    %164 = vmatprep.subr.bf16.mxu0 0
    %165 = vmatpush1.bf16.msra.mxu0 0
    %166 = vmatprep.subr.bf16.mxu0 0
    %167 = vmatpush1.bf16.msra.mxu0 0
    %168 = vmatprep.subr.bf16.mxu0 0
    %169 = vmatpush1.bf16.msra.mxu0 0
    %170 = vmatprep.subr.bf16.mxu0 0
    %171 = vmatpush1.bf16.msra.mxu0 0
    %172 = vmatprep.subr.bf16.mxu0 0
    %173 = vmatpush1.bf16.msra.mxu0 0
    %174 = vmatprep.subr.bf16.mxu0 0
    %175 = vmatpush1.bf16.msra.mxu0 0
    %176 = vmatprep.subr.bf16.mxu0 0
    %177 = vmatpush1.bf16.msra.mxu0 0
    %178 = vmatprep.mubr.bf16.mxu0 0
    %179 = vmatmul.mubr.bf16.gmra.mrb[0].mxu0 %v123
    %v180 = vpop.f32.mrb[0].mxu0
    %v181 = vadd.f32 %v67, %v180
    %v182 = vpop.f32.mrb[0].mxu0
    %v183 = vpop.f32.mrb[0].mxu0
    %v184 = vadd.f32 %v67, %v183
    %v185 = vpop.f32.mrb[0].mxu0
    %186 = vmatprep.mubr.bf16.mxu0 0
    %187 = vmatmul.mubr.bf16.gmra.mrb[0].mxu0 %v126
    %v188 = vpop.f32.mrb[0].mxu0
    %v189 = vadd.f32 %v67, %v188
    %v190 = vpop.f32.mrb[0].mxu0
    %v191 = vpop.f32.mrb[0].mxu0
    %v192 = vadd.f32 %v67, %v191
    %v193 = vpop.f32.mrb[0].mxu0
    %194 = vmatprep.mubr.bf16.mxu0 0
    %195 = vmatmul.mubr.bf16.gmra.mrb[0].mxu0 %v129
    %v196 = vpop.f32.mrb[0].mxu0
    %v197 = vadd.f32 %v67, %v196
    %v198 = vpop.f32.mrb[0].mxu0
    %v199 = vpop.f32.mrb[0].mxu0
    %v200 = vadd.f32 %v67, %v199
    %v201 = vpop.f32.mrb[0].mxu0
    %202 = vmatprep.mubr.bf16.mxu0 0
    %203 = vmatmul.mubr.bf16.gmra.mrb[0].mxu0 %v132
    %v204 = vpop.f32.mrb[0].mxu0
    %v205 = vadd.f32 %v67, %v204
    %v206 = vpop.f32.mrb[0].mxu0
    %v207 = vpop.f32.mrb[0].mxu0
    %v208 = vadd.f32 %v67, %v207
    %v209 = vpop.f32.mrb[0].mxu0
    %210 = vmatprep.mubr.bf16.mxu0 0
    %211 = vmatmul.mubr.bf16.gmra.mrb[0].mxu0 %v135
    %v212 = vpop.f32.mrb[0].mxu0
    %v213 = vadd.f32 %v67, %v212
    %v214 = vpop.f32.mrb[0].mxu0
    %v215 = vpop.f32.mrb[0].mxu0
    %v216 = vadd.f32 %v67, %v215
    %v217 = vpop.f32.mrb[0].mxu0
    %218 = vmatprep.mubr.bf16.mxu0 0
    %219 = vmatmul.mubr.bf16.gmra.mrb[0].mxu0 %v138
    %v220 = vpop.f32.mrb[0].mxu0
    %v221 = vadd.f32 %v67, %v220
    %v222 = vpop.f32.mrb[0].mxu0
    %v223 = vpop.f32.mrb[0].mxu0
    %v224 = vadd.f32 %v67, %v223
    %v225 = vpop.f32.mrb[0].mxu0
    %226 = vmatprep.mubr.bf16.mxu0 0
    %227 = vmatmul.mubr.bf16.gmra.mrb[0].mxu0 %v141
    %v228 = vpop.f32.mrb[0].mxu0
    %v229 = vadd.f32 %v67, %v228
    %v230 = vpop.f32.mrb[0].mxu0
    %v231 = vpop.f32.mrb[0].mxu0
    %v232 = vadd.f32 %v67, %v231
    %v233 = vpop.f32.mrb[0].mxu0
    %234 = vmatprep.mubr.bf16.mxu0 0
    %235 = vmatmul.mubr.bf16.gmra.mrb[0].mxu0 %v144
    %v236 = vpop.f32.mrb[0].mxu0
    %v237 = vadd.f32 %v67, %v236
    %v238 = vpop.f32.mrb[0].mxu0
    %v239 = vpop.f32.mrb[0].mxu0
    %v240 = vadd.f32 %v67, %v239
    %v241 = vpop.f32.mrb[0].mxu0
    %242 = vdwg.mxu0
    %v243 = vmax.f32 %v181, 0.0
    %v244 = vmax.f32 %v184, 0.0
    %v245 = vmax.f32 %v189, 0.0
    %v246 = vmax.f32 %v192, 0.0
    %v247 = vmax.f32 %v197, 0.0
    %v248 = vmax.f32 %v200, 0.0
    %v249 = vmax.f32 %v205, 0.0
    %v250 = vmax.f32 %v208, 0.0
    %v251 = vmax.f32 %v213, 0.0
    %v252 = vmax.f32 %v216, 0.0
    %v253 = vmax.f32 %v221, 0.0
    %v254 = vmax.f32 %v224, 0.0
    %v255 = vmax.f32 %v229, 0.0
    %v256 = vmax.f32 %v232, 0.0
    %v257 = vmax.f32 %v237, 0.0
    %v258 = vmax.f32 %v240, 0.0
    %v259 = vpack.c.bf16 %v244, %v243
    %v260 = vpack.c.bf16 %v246, %v245
    %v261 = vpack.c.bf16 %v248, %v247
    %v262 = vpack.c.bf16 %v250, %v249
    %v263 = vpack.c.bf16 %v252, %v251
    %v264 = vpack.c.bf16 %v254, %v253
    %v265 = vpack.c.bf16 %v256, %v255
    %v266 = vpack.c.bf16 %v258, %v257
    %v267 = vld [vmem:[%s3] sm:$0xf]
    %v268 = vld [vmem:[%s3 + $0x4] sm:$0xf]
    %v269 = vld [vmem:[%s3 + $0x8] sm:$0xf]
    %v270 = vld [vmem:[%s3 + $0xc] sm:$0xf]
    %v271 = vld [vmem:[%s3 + $0x10] sm:$0xf]
    %v272 = vld [vmem:[%s3 + $0x14] sm:$0xf]
    %v273 = vld [vmem:[%s3 + $0x18] sm:$0xf]
    %v274 = vld [vmem:[%s3 + $0x1c] sm:$0xf]
    %v275 = vld [vmem:[%s3 + $0x20] sm:$0xf]
    %v276 = vld [vmem:[%s3 + $0x24] sm:$0xf]
    %v277 = vld [vmem:[%s3 + $0x28] sm:$0xf]
    %v278 = vld [vmem:[%s3 + $0x2c] sm:$0xf]
    %v279 = vld [vmem:[%s3 + $0x30] sm:$0xf]
    %v280 = vld [vmem:[%s3 + $0x34] sm:$0xf]
    %v281 = vld [vmem:[%s3 + $0x38] sm:$0xf]
    %v282 = vld [vmem:[%s3 + $0x3c] sm:$0xf]
    %v283 = vld [vmem:[%s4] sm:$0x1]
    %v285 = vlaneseq
    %v286 = vshrl.u32 %v285, 7
    %v287 = vsub.s32 0, %v286
    %v288 = vrot.slane %v283, %v287
    %v306 = vunpack.c.l.b16 %v267
    %v307 = vunpack.c.l.b16 %v268
    %v308 = vunpack.c.l.b16 %v269
    %v309 = vunpack.c.l.b16 %v270
    %v310 = vunpack.c.l.b16 %v271
    %v311 = vunpack.c.l.b16 %v272
    %v312 = vunpack.c.l.b16 %v273
    %v313 = vunpack.c.l.b16 %v274
    %v314 = vunpack.c.l.b16 %v275
    %v315 = vunpack.c.l.b16 %v276
    %v316 = vunpack.c.l.b16 %v277
    %v317 = vunpack.c.l.b16 %v278
    %v318 = vunpack.c.l.b16 %v279
    %v319 = vunpack.c.l.b16 %v280
    %v320 = vunpack.c.l.b16 %v281
    %v321 = vunpack.c.l.b16 %v282
    %v322 = vpack.c.b16 %v307, %v306
    %v323 = vpack.c.b16 %v309, %v308
    %v324 = vpack.c.b16 %v311, %v310
    %v325 = vpack.c.b16 %v313, %v312
    %v326 = vpack.c.b16 %v315, %v314
    %v327 = vpack.c.b16 %v317, %v316
    %v328 = vpack.c.b16 %v319, %v318
    %v329 = vpack.c.b16 %v321, %v320
    %338 = vmatprep.subr.bf16.mxu0 0
    %339 = vmatpush1.bf16.msra.mxu0 %v322
    %340 = vmatprep.subr.bf16.mxu0 0
    %341 = vmatpush1.bf16.msra.mxu0 %v323
    %342 = vmatprep.subr.bf16.mxu0 0
    %343 = vmatpush1.bf16.msra.mxu0 %v324
    %344 = vmatprep.subr.bf16.mxu0 0
    %345 = vmatpush1.bf16.msra.mxu0 %v325
    %346 = vmatprep.subr.bf16.mxu0 0
    %347 = vmatpush1.bf16.msra.mxu0 %v326
    %348 = vmatprep.subr.bf16.mxu0 0
    %349 = vmatpush1.bf16.msra.mxu0 %v327
    %350 = vmatprep.subr.bf16.mxu0 0
    %351 = vmatpush1.bf16.msra.mxu0 %v328
    %352 = vmatprep.subr.bf16.mxu0 0
    %353 = vmatpush1.bf16.msra.mxu0 %v329
    %354 = vmatprep.subr.bf16.mxu0 0
    %355 = vmatpush1.bf16.msra.mxu0 0
    %356 = vmatprep.subr.bf16.mxu0 0
    %357 = vmatpush1.bf16.msra.mxu0 0
    %358 = vmatprep.subr.bf16.mxu0 0
    %359 = vmatpush1.bf16.msra.mxu0 0
    %360 = vmatprep.subr.bf16.mxu0 0
    %361 = vmatpush1.bf16.msra.mxu0 0
    %362 = vmatprep.subr.bf16.mxu0 0
    %363 = vmatpush1.bf16.msra.mxu0 0
    %364 = vmatprep.subr.bf16.mxu0 0
    %365 = vmatpush1.bf16.msra.mxu0 0
    %366 = vmatprep.subr.bf16.mxu0 0
    %367 = vmatpush1.bf16.msra.mxu0 0
    %368 = vmatprep.subr.bf16.mxu0 0
    %369 = vmatpush1.bf16.msra.mxu0 0
    %370 = vmatprep.mubr.bf16.mxu0 0
    %371 = vmatmul.mubr.bf16.gmra.mrb[0].mxu0 %v259
    %v372 = vpop.f32.mrb[0].mxu0
    %v373 = vadd.f32 %v288, %v372
    %v374 = vpop.f32.mrb[0].mxu0
    %v375 = vpop.f32.mrb[0].mxu0
    %v376 = vadd.f32 %v288, %v375
    %v377 = vpop.f32.mrb[0].mxu0
    %378 = vmatprep.mubr.bf16.mxu0 0
    %379 = vmatmul.mubr.bf16.gmra.mrb[0].mxu0 %v260
    %v380 = vpop.f32.mrb[0].mxu0
    %v381 = vadd.f32 %v288, %v380
    %v382 = vpop.f32.mrb[0].mxu0
    %v383 = vpop.f32.mrb[0].mxu0
    %v384 = vadd.f32 %v288, %v383
    %v385 = vpop.f32.mrb[0].mxu0
    %386 = vmatprep.mubr.bf16.mxu0 0
    %387 = vmatmul.mubr.bf16.gmra.mrb[0].mxu0 %v261
    %v388 = vpop.f32.mrb[0].mxu0
    %v389 = vadd.f32 %v288, %v388
    %v390 = vpop.f32.mrb[0].mxu0
    %v391 = vpop.f32.mrb[0].mxu0
    %v392 = vadd.f32 %v288, %v391
    %v393 = vpop.f32.mrb[0].mxu0
    %394 = vmatprep.mubr.bf16.mxu0 0
    %395 = vmatmul.mubr.bf16.gmra.mrb[0].mxu0 %v262
    %v396 = vpop.f32.mrb[0].mxu0
    %v397 = vadd.f32 %v288, %v396
    %v398 = vpop.f32.mrb[0].mxu0
    %v399 = vpop.f32.mrb[0].mxu0
    %v400 = vadd.f32 %v288, %v399
    %v401 = vpop.f32.mrb[0].mxu0
    %402 = vmatprep.mubr.bf16.mxu0 0
    %403 = vmatmul.mubr.bf16.gmra.mrb[0].mxu0 %v263
    %v404 = vpop.f32.mrb[0].mxu0
    %v405 = vadd.f32 %v288, %v404
    %v406 = vpop.f32.mrb[0].mxu0
    %v407 = vpop.f32.mrb[0].mxu0
    %v408 = vadd.f32 %v288, %v407
    %v409 = vpop.f32.mrb[0].mxu0
    %410 = vmatprep.mubr.bf16.mxu0 0
    %411 = vmatmul.mubr.bf16.gmra.mrb[0].mxu0 %v264
    %v412 = vpop.f32.mrb[0].mxu0
    %v413 = vadd.f32 %v288, %v412
    %v414 = vpop.f32.mrb[0].mxu0
    %v415 = vpop.f32.mrb[0].mxu0
    %v416 = vadd.f32 %v288, %v415
    %v417 = vpop.f32.mrb[0].mxu0
    %418 = vmatprep.mubr.bf16.mxu0 0
    %419 = vmatmul.mubr.bf16.gmra.mrb[0].mxu0 %v265
    %v420 = vpop.f32.mrb[0].mxu0
    %v421 = vadd.f32 %v288, %v420
    %v422 = vpop.f32.mrb[0].mxu0
    %v423 = vpop.f32.mrb[0].mxu0
    %v424 = vadd.f32 %v288, %v423
    %v425 = vpop.f32.mrb[0].mxu0
    %426 = vmatprep.mubr.bf16.mxu0 0
    %427 = vmatmul.mubr.bf16.gmra.mrb[0].mxu0 %v266
    %v428 = vpop.f32.mrb[0].mxu0
    %v429 = vadd.f32 %v288, %v428
    %v430 = vpop.f32.mrb[0].mxu0
    %v431 = vpop.f32.mrb[0].mxu0
    %v432 = vadd.f32 %v288, %v431
    %v433 = vpop.f32.mrb[0].mxu0
    %434 = vdwg.mxu0
    %v435 = vmax.f32 %v373, 0.0
    %v436 = vmax.f32 %v376, 0.0
    %v437 = vmax.f32 %v381, 0.0
    %v438 = vmax.f32 %v384, 0.0
    %v439 = vmax.f32 %v389, 0.0
    %v440 = vmax.f32 %v392, 0.0
    %v441 = vmax.f32 %v397, 0.0
    %v442 = vmax.f32 %v400, 0.0
    %v443 = vmax.f32 %v405, 0.0
    %v444 = vmax.f32 %v408, 0.0
    %v445 = vmax.f32 %v413, 0.0
    %v446 = vmax.f32 %v416, 0.0
    %v447 = vmax.f32 %v421, 0.0
    %v448 = vmax.f32 %v424, 0.0
    %v449 = vmax.f32 %v429, 0.0
    %v450 = vmax.f32 %v432, 0.0
    %v451 = vpack.c.bf16 %v436, %v435
    %v452 = vpack.c.bf16 %v438, %v437
    %v453 = vpack.c.bf16 %v440, %v439
    %v454 = vpack.c.bf16 %v442, %v441
    %v455 = vpack.c.bf16 %v444, %v443
    %v456 = vpack.c.bf16 %v446, %v445
    %v457 = vpack.c.bf16 %v448, %v447
    %v458 = vpack.c.bf16 %v450, %v449
    %v459 = vld [vmem:[#allocation2] sm:$0xf]
    %v460 = vld [vmem:[#allocation2 + $0x4] sm:$0xf]
    %v461 = vld [vmem:[#allocation2 + $0x8] sm:$0xf]
    %v462 = vld [vmem:[#allocation2 + $0xc] sm:$0xf]
    %v463 = vld [vmem:[#allocation2 + $0x10] sm:$0xf]
    %v464 = vld [vmem:[#allocation2 + $0x14] sm:$0xf]
    %v465 = vld [vmem:[#allocation2 + $0x18] sm:$0xf]
    %v466 = vld [vmem:[#allocation2 + $0x1c] sm:$0xf]
    %v467 = vld [vmem:[#allocation2 + $0x20] sm:$0xf]
    %v468 = vld [vmem:[#allocation2 + $0x24] sm:$0xf]
    %v469 = vld [vmem:[#allocation2 + $0x28] sm:$0xf]
    %v470 = vld [vmem:[#allocation2 + $0x2c] sm:$0xf]
    %v471 = vld [vmem:[#allocation2 + $0x30] sm:$0xf]
    %v472 = vld [vmem:[#allocation2 + $0x34] sm:$0xf]
    %v473 = vld [vmem:[#allocation2 + $0x38] sm:$0xf]
    %v474 = vld [vmem:[#allocation2 + $0x3c] sm:$0xf]
    %v475 = vld [vmem:[%s6] sm:$0x1]
    %v477 = vlaneseq
    %v478 = vshrl.u32 %v477, 7
    %v479 = vsub.s32 0, %v478
    %v480 = vrot.slane %v475, %v479
    %v498 = vunpack.c.l.b16 %v459
    %v499 = vunpack.c.l.b16 %v460
    %v500 = vunpack.c.l.b16 %v461
    %v501 = vunpack.c.l.b16 %v462
    %v502 = vunpack.c.l.b16 %v463
    %v503 = vunpack.c.l.b16 %v464
    %v504 = vunpack.c.l.b16 %v465
    %v505 = vunpack.c.l.b16 %v466
    %v506 = vunpack.c.l.b16 %v467
    %v507 = vunpack.c.l.b16 %v468
    %v508 = vunpack.c.l.b16 %v469
    %v509 = vunpack.c.l.b16 %v470
    %v510 = vunpack.c.l.b16 %v471
    %v511 = vunpack.c.l.b16 %v472
    %v512 = vunpack.c.l.b16 %v473
    %v513 = vunpack.c.l.b16 %v474
    %v514 = vpack.c.b16 %v499, %v498
    %v515 = vpack.c.b16 %v501, %v500
    %v516 = vpack.c.b16 %v503, %v502
    %v517 = vpack.c.b16 %v505, %v504
    %v518 = vpack.c.b16 %v507, %v506
    %v519 = vpack.c.b16 %v509, %v508
    %v520 = vpack.c.b16 %v511, %v510
    %v521 = vpack.c.b16 %v513, %v512
    %530 = vmatprep.subr.bf16.mxu0 0
    %531 = vmatpush1.bf16.msra.mxu0 %v514
    %532 = vmatprep.subr.bf16.mxu0 0
    %533 = vmatpush1.bf16.msra.mxu0 %v515
    %534 = vmatprep.subr.bf16.mxu0 0
    %535 = vmatpush1.bf16.msra.mxu0 %v516
    %536 = vmatprep.subr.bf16.mxu0 0
    %537 = vmatpush1.bf16.msra.mxu0 %v517
    %538 = vmatprep.subr.bf16.mxu0 0
    %539 = vmatpush1.bf16.msra.mxu0 %v518
    %540 = vmatprep.subr.bf16.mxu0 0
    %541 = vmatpush1.bf16.msra.mxu0 %v519
    %542 = vmatprep.subr.bf16.mxu0 0
    %543 = vmatpush1.bf16.msra.mxu0 %v520
    %544 = vmatprep.subr.bf16.mxu0 0
    %545 = vmatpush1.bf16.msra.mxu0 %v521
    %546 = vmatprep.subr.bf16.mxu0 0
    %547 = vmatpush1.bf16.msra.mxu0 0
    %548 = vmatprep.subr.bf16.mxu0 0
    %549 = vmatpush1.bf16.msra.mxu0 0
    %550 = vmatprep.subr.bf16.mxu0 0
    %551 = vmatpush1.bf16.msra.mxu0 0
    %552 = vmatprep.subr.bf16.mxu0 0
    %553 = vmatpush1.bf16.msra.mxu0 0
    %554 = vmatprep.subr.bf16.mxu0 0
    %555 = vmatpush1.bf16.msra.mxu0 0
    %556 = vmatprep.subr.bf16.mxu0 0
    %557 = vmatpush1.bf16.msra.mxu0 0
    %558 = vmatprep.subr.bf16.mxu0 0
    %559 = vmatpush1.bf16.msra.mxu0 0
    %560 = vmatprep.subr.bf16.mxu0 0
    %561 = vmatpush1.bf16.msra.mxu0 0
    %562 = vmatprep.mubr.bf16.mxu0 0
    %563 = vmatmul.mubr.bf16.gmra.mrb[0].mxu0 %v451
    %v564 = vpop.f32.mrb[0].mxu0
    %v565 = vadd.f32 %v480, %v564
    %v566 = vpop.f32.mrb[0].mxu0
    %v567 = vpop.f32.mrb[0].mxu0
    %v568 = vadd.f32 %v480, %v567
    %v569 = vpop.f32.mrb[0].mxu0
    %570 = vmatprep.mubr.bf16.mxu0 0
    %571 = vmatmul.mubr.bf16.gmra.mrb[0].mxu0 %v452
    %v572 = vpop.f32.mrb[0].mxu0
    %v573 = vadd.f32 %v480, %v572
    %v574 = vpop.f32.mrb[0].mxu0
    %v575 = vpop.f32.mrb[0].mxu0
    %v576 = vadd.f32 %v480, %v575
    %v577 = vpop.f32.mrb[0].mxu0
    %578 = vmatprep.mubr.bf16.mxu0 0
    %579 = vmatmul.mubr.bf16.gmra.mrb[0].mxu0 %v453
    %v580 = vpop.f32.mrb[0].mxu0
    %v581 = vadd.f32 %v480, %v580
    %v582 = vpop.f32.mrb[0].mxu0
    %v583 = vpop.f32.mrb[0].mxu0
    %v584 = vadd.f32 %v480, %v583
    %v585 = vpop.f32.mrb[0].mxu0
    %586 = vmatprep.mubr.bf16.mxu0 0
    %587 = vmatmul.mubr.bf16.gmra.mrb[0].mxu0 %v454
    %v588 = vpop.f32.mrb[0].mxu0
    %v589 = vadd.f32 %v480, %v588
    %v590 = vpop.f32.mrb[0].mxu0
    %v591 = vpop.f32.mrb[0].mxu0
    %v592 = vadd.f32 %v480, %v591
    %v593 = vpop.f32.mrb[0].mxu0
    %594 = vmatprep.mubr.bf16.mxu0 0
    %595 = vmatmul.mubr.bf16.gmra.mrb[0].mxu0 %v455
    %v596 = vpop.f32.mrb[0].mxu0
    %v597 = vadd.f32 %v480, %v596
    %v598 = vpop.f32.mrb[0].mxu0
    %v599 = vpop.f32.mrb[0].mxu0
    %v600 = vadd.f32 %v480, %v599
    %v601 = vpop.f32.mrb[0].mxu0
    %602 = vmatprep.mubr.bf16.mxu0 0
    %603 = vmatmul.mubr.bf16.gmra.mrb[0].mxu0 %v456
    %v604 = vpop.f32.mrb[0].mxu0
    %v605 = vadd.f32 %v480, %v604
    %v606 = vpop.f32.mrb[0].mxu0
    %v607 = vpop.f32.mrb[0].mxu0
    %v608 = vadd.f32 %v480, %v607
    %v609 = vpop.f32.mrb[0].mxu0
    %610 = vmatprep.mubr.bf16.mxu0 0
    %611 = vmatmul.mubr.bf16.gmra.mrb[0].mxu0 %v457
    %v612 = vpop.f32.mrb[0].mxu0
    %v613 = vadd.f32 %v480, %v612
    %v614 = vpop.f32.mrb[0].mxu0
    %v615 = vpop.f32.mrb[0].mxu0
    %v616 = vadd.f32 %v480, %v615
    %v617 = vpop.f32.mrb[0].mxu0
    %618 = vmatprep.mubr.bf16.mxu0 0
    %619 = vmatmul.mubr.bf16.gmra.mrb[0].mxu0 %v458
    %v620 = vpop.f32.mrb[0].mxu0
    %v621 = vadd.f32 %v480, %v620
    %v622 = vpop.f32.mrb[0].mxu0
    %v623 = vpop.f32.mrb[0].mxu0
    %v624 = vadd.f32 %v480, %v623
    %v625 = vpop.f32.mrb[0].mxu0
    %626 = vdwg.mxu0
    %627 = vst [vmem:[#allocation5] sm:$0xff] %v565
    %628 = vst [vmem:[#allocation5 + $0x8] sm:$0xff] %v568
    %629 = vst [vmem:[#allocation5 + $0x10] sm:$0xff] %v573
    %630 = vst [vmem:[#allocation5 + $0x18] sm:$0xff] %v576
    %631 = vst [vmem:[#allocation5 + $0x20] sm:$0xff] %v581
    %632 = vst [vmem:[#allocation5 + $0x28] sm:$0xff] %v584
    %633 = vst [vmem:[#allocation5 + $0x30] sm:$0xff] %v589
    %634 = vst [vmem:[#allocation5 + $0x38] sm:$0xff] %v592
    %635 = vst [vmem:[#allocation5 + $0x40] sm:$0xff] %v597
    %636 = vst [vmem:[#allocation5 + $0x48] sm:$0xff] %v600
    %637 = vst [vmem:[#allocation5 + $0x50] sm:$0xff] %v605
    %638 = vst [vmem:[#allocation5 + $0x58] sm:$0xff] %v608
    %639 = vst [vmem:[#allocation5 + $0x60] sm:$0xff] %v613
    %640 = vst [vmem:[#allocation5 + $0x68] sm:$0xff] %v616
    %641 = vst [vmem:[#allocation5 + $0x70] sm:$0xff] %v621
    %642 = vst [vmem:[#allocation5 + $0x78] sm:$0xff] %v624
    // Predicated region
    $region34: #{tpu_custom_call.1} parent=1 // pred_check
      _
    $region35: #{tpu_custom_call.1} parent=1 // pred_check_branch
      %644 = sbr.rel (0) target = $region37
    $region36: #{tpu_custom_call.1} parent=1 // pred_region
      %s646 = ssub.s32 2048, 2048
      %647 = vsyncadd [#allocation4], %s646
      %s648 = sshll.u32 [#allocation5], 4
      %s649 = int_to_ptr.vmem [resolvable:$true] %s648
      %654 = dma.vmem_to_hbm [thread:$0]  %s649, 2048, %s7, [#allocation4], 128, 128, 8
    $region37: #{tpu_custom_call.1} parent=1 // pred_fallthru
      _
    // Predicated region
    $region38: #{tpu_custom_call.1} parent=1 // pred_check
      _
    $region39: #{tpu_custom_call.1} parent=1 // pred_check_branch
      %656 = sbr.rel (0) target = $region41
    $region40: #{tpu_custom_call.1} parent=1 // pred_region
      %657 = dma.done [#allocation4], 2048
    $region41: #{tpu_custom_call.1} parent=1 // pred_fallthru
      _
    %658 = vsyncpa [#allocation3], 1
    %659 = vsyncpa [#allocation4], 1

// kernel: tpu_custom_call.1
$region0: #{tpu_custom_call.1}
  #allocation0 [shape = 'u32[]', space=smem, size = 0x4, offset = 0x4, fixed_abs, tag = 'smem constant byte address 0x4 - core index']
  #allocation1 [shape = 'u32[144,128]{1,0:T(1,128)}', space=vmem, size = 0x12000, scoped, tag = 'internal scratch']
  %s0 = inlined_call_operand.vmem [shape: bf16[128,32], index: 0, kind: input, shape index: {}]
  %s1 = inlined_call_operand.vmem [shape: bf16[32,128], index: 1, kind: input, shape index: {}]
  %s2 = inlined_call_operand.vmem [shape: f32[1,128], index: 2, kind: input, shape index: {}]
  %s3 = inlined_call_operand.vmem [shape: bf16[128,128], index: 3, kind: input, shape index: {}]
  %s4 = inlined_call_operand.vmem [shape: f32[1,128], index: 4, kind: input, shape index: {}]
  %s5 = inlined_call_operand.hbm [shape: bf16[128,128], index: 5, kind: input, shape index: {}]
  %s6 = inlined_call_operand.vmem [shape: f32[1,128], index: 6, kind: input, shape index: {}]
  %s7 = inlined_call_operand.hbm [shape: f32[128,128], index: 7, kind: output, shape index: {}]
  %s8 = sld [smem:[#allocation0]]
  $region42: #{tpu_custom_call.1} parent=0
    _
  %s10 = ssub.s32 1, %s8
  %s11 = scalar_select 0, %s10, %s8
  $region1: #{tpu_custom_call.1} parent=0
    #allocation2 [shape = 'u8[32768]{0}', space=vmem, size = 0x8000, scoped, tag = 'input window, operand 5, single buffered']
    #allocation3 [shape = 's32[1]{0}', space=sflag, size = 0x4, scoped, tag = 'scoped memory for tpu_custom_call.1']
    #allocation4 [shape = 's32[1]{0}', space=sflag, size = 0x4, scoped, tag = 'scoped memory for tpu_custom_call.1']
    #allocation5 [shape = 'u8[65536]{0}', space=vmem, size = 0x10000, scoped, tag = 'output window, operand 0, single buffered']
    %12 = vsyncpa [#allocation3], 0
    %13 = vsyncpa [#allocation4], 0
    // Predicated region
    $region2: #{tpu_custom_call.1} parent=1 // pred_check
      _
    $region3: #{tpu_custom_call.1} parent=1 // pred_check_branch
      %15 = sbr.rel (0) target = $region5
    $region4: #{tpu_custom_call.1} parent=1 // pred_region
      _
    $region5: #{tpu_custom_call.1} parent=1 // pred_fallthru
      _
    // Predicated region
    $region6: #{tpu_custom_call.1} parent=1 // pred_check
      _
    $region7: #{tpu_custom_call.1} parent=1 // pred_check_branch
      %17 = sbr.rel (0) target = $region9
    $region8: #{tpu_custom_call.1} parent=1 // pred_region
      _
    $region9: #{tpu_custom_call.1} parent=1 // pred_fallthru
      _
    // Predicated region
    $region10: #{tpu_custom_call.1} parent=1 // pred_check
      _
    $region11: #{tpu_custom_call.1} parent=1 // pred_check_branch
      %19 = sbr.rel (0) target = $region13
    $region12: #{tpu_custom_call.1} parent=1 // pred_region
      _
    $region13: #{tpu_custom_call.1} parent=1 // pred_fallthru
      _
    // Predicated region
    $region14: #{tpu_custom_call.1} parent=1 // pred_check
      _
    $region15: #{tpu_custom_call.1} parent=1 // pred_check_branch
      %21 = sbr.rel (0) target = $region17
    $region16: #{tpu_custom_call.1} parent=1 // pred_region
      _
    $region17: #{tpu_custom_call.1} parent=1 // pred_fallthru
      _
    // Predicated region
    $region18: #{tpu_custom_call.1} parent=1 // pred_check
      _
    $region19: #{tpu_custom_call.1} parent=1 // pred_check_branch
      %23 = sbr.rel (0) target = $region21
    $region20: #{tpu_custom_call.1} parent=1 // pred_region
      _
    $region21: #{tpu_custom_call.1} parent=1 // pred_fallthru
      _
    // Predicated region
    $region22: #{tpu_custom_call.1} parent=1 // pred_check
      _
    $region23: #{tpu_custom_call.1} parent=1 // pred_check_branch
      %25 = sbr.rel (0) target = $region25
    $region24: #{tpu_custom_call.1} parent=1 // pred_region
      %s27 = ssub.s32 1024, 1024
      %28 = vsyncadd [#allocation3], %s27
      %s29 = sshll.u32 [#allocation2], 4
      %s30 = int_to_ptr.vmem [resolvable:$true] %s29
      %35 = dma.hbm_to_vmem [thread:$0]  %s5, 1024, %s30, [#allocation3], 64, 64, 4
    $region25: #{tpu_custom_call.1} parent=1 // pred_fallthru
      _
    // Predicated region
    $region26: #{tpu_custom_call.1} parent=1 // pred_check
      _
    $region27: #{tpu_custom_call.1} parent=1 // pred_check_branch
      %37 = sbr.rel (0) target = $region29
    $region28: #{tpu_custom_call.1} parent=1 // pred_region
      _
    $region29: #{tpu_custom_call.1} parent=1 // pred_fallthru
      _
    // Predicated region
    $region30: #{tpu_custom_call.1} parent=1 // pred_check
      _
    $region31: #{tpu_custom_call.1} parent=1 // pred_check_branch
      %39 = sbr.rel (0) target = $region33
    $region32: #{tpu_custom_call.1} parent=1 // pred_region
      %40 = dma.done [#allocation3], 1024
    $region33: #{tpu_custom_call.1} parent=1 // pred_fallthru
      _
    %v42 = vld [vmem:[%s0] sm:$0xf]
    %v43 = vld [vmem:[%s0 + $0x4] sm:$0xf]
    %v44 = vld [vmem:[%s0 + $0x8] sm:$0xf]
    %v45 = vld [vmem:[%s0 + $0xc] sm:$0xf]
    %v46 = vld [vmem:[%s0 + $0x10] sm:$0xf]
    %v47 = vld [vmem:[%s0 + $0x14] sm:$0xf]
    %v48 = vld [vmem:[%s0 + $0x18] sm:$0xf]
    %v49 = vld [vmem:[%s0 + $0x1c] sm:$0xf]
    %v50 = vld [vmem:[%s0 + $0x20] sm:$0xf]
    %v51 = vld [vmem:[%s0 + $0x24] sm:$0xf]
    %v52 = vld [vmem:[%s0 + $0x28] sm:$0xf]
    %v53 = vld [vmem:[%s0 + $0x2c] sm:$0xf]
    %v54 = vld [vmem:[%s0 + $0x30] sm:$0xf]
    %v55 = vld [vmem:[%s0 + $0x34] sm:$0xf]
    %v56 = vld [vmem:[%s0 + $0x38] sm:$0xf]
    %v57 = vld [vmem:[%s0 + $0x3c] sm:$0xf]
    %v58 = vld [vmem:[%s1] sm:$0xf]
    %v59 = vld [vmem:[%s1 + $0x4] sm:$0xf]
    %v60 = vld [vmem:[%s1 + $0x8] sm:$0xf]
    %v61 = vld [vmem:[%s1 + $0xc] sm:$0xf]
    %v62 = vld [vmem:[%s2] sm:$0x1]
    %v64 = vlaneseq
    %v65 = vshrl.u32 %v64, 7
    %v66 = vsub.s32 0, %v65
    %v67 = vrot.slane %v62, %v66
    %v85 = vunpack.c.l.b16 %v42
    %v86 = vunpack.c.l.b16 %v43
    %v87 = vunpack.c.l.b16 %v44
    %v88 = vunpack.c.l.b16 %v45
    %v89 = vunpack.c.l.b16 %v46
    %v90 = vunpack.c.l.b16 %v47
    %v91 = vunpack.c.l.b16 %v48
    %v92 = vunpack.c.l.b16 %v49
    %v93 = vunpack.c.l.b16 %v50
    %v94 = vunpack.c.l.b16 %v51
    %v95 = vunpack.c.l.b16 %v52
    %v96 = vunpack.c.l.b16 %v53
    %v97 = vunpack.c.l.b16 %v54
    %v98 = vunpack.c.l.b16 %v55
    %v99 = vunpack.c.l.b16 %v56
    %v100 = vunpack.c.l.b16 %v57
    %v101 = vpack.c.b16 %v86, %v85
    %v102 = vpack.c.b16 %v88, %v87
    %v103 = vpack.c.b16 %v90, %v89
    %v104 = vpack.c.b16 %v92, %v91
    %v105 = vpack.c.b16 %v94, %v93
    %v106 = vpack.c.b16 %v96, %v95
    %v107 = vpack.c.b16 %v98, %v97
    %v108 = vpack.c.b16 %v100, %v99
    %v113 = vunpack.c.l.b16 %v58
    %v114 = vunpack.c.l.b16 %v59
    %v115 = vunpack.c.l.b16 %v60
    %v116 = vunpack.c.l.b16 %v61
    %v117 = vpack.c.b16 %v114, %v113
    %v118 = vpack.c.b16 %v116, %v115
    %vm121 = vcmask 261120
    %v123 = vsel %vm121, %v101, 0
    %v126 = vsel %vm121, %v102, 0
    %v129 = vsel %vm121, %v103, 0
    %v132 = vsel %vm121, %v104, 0
    %v135 = vsel %vm121, %v105, 0
    %v138 = vsel %vm121, %v106, 0
    %v141 = vsel %vm121, %v107, 0
    %v144 = vsel %vm121, %v108, 0
    %146 = vmatprep.subr.bf16.mxu0 0
    %147 = vmatpush1.bf16.msra.mxu0 %v117
    %148 = vmatprep.subr.bf16.mxu0 0
    %149 = vmatpush1.bf16.msra.mxu0 %v118
    %150 = vmatprep.subr.bf16.mxu0 0
    %151 = vmatpush1.bf16.msra.mxu0 0
    %152 = vmatprep.subr.bf16.mxu0 0
    %153 = vmatpush1.bf16.msra.mxu0 0
    %154 = vmatprep.subr.bf16.mxu0 0
    %155 = vmatpush1.bf16.msra.mxu0 0
    %156 = vmatprep.subr.bf16.mxu0 0
    %157 = vmatpush1.bf16.msra.mxu0 0
    %158 = vmatprep.subr.bf16.mxu0 0
    %159 = vmatpush1.bf16.msra.mxu0 0
    %160 = vmatprep.subr.bf16.mxu0 0
    %161 = vmatpush1.bf16.msra.mxu0 0
    %162 = vmatprep.subr.bf16.mxu0 0
    %163 = vmatpush1.bf16.msra.mxu0 0
    %164 = vmatprep.subr.bf16.mxu0 0
    %165 = vmatpush1.bf16.msra.mxu0 0
    %166 = vmatprep.subr.bf16.mxu0 0
    %167 = vmatpush1.bf16.msra.mxu0 0
    %168 = vmatprep.subr.bf16.mxu0 0
    %169 = vmatpush1.bf16.msra.mxu0 0
    %170 = vmatprep.subr.bf16.mxu0 0
    %171 = vmatpush1.bf16.msra.mxu0 0
    %172 = vmatprep.subr.bf16.mxu0 0
    %173 = vmatpush1.bf16.msra.mxu0 0
    %174 = vmatprep.subr.bf16.mxu0 0
    %175 = vmatpush1.bf16.msra.mxu0 0
    %176 = vmatprep.subr.bf16.mxu0 0
    %177 = vmatpush1.bf16.msra.mxu0 0
    %178 = vmatprep.mubr.bf16.mxu0 0
    %179 = vmatmul.mubr.bf16.gmra.mrb[0].mxu0 %v123
    %v180 = vpop.f32.mrb[0].mxu0
    %v181 = vadd.f32 %v67, %v180
    %v182 = vpop.f32.mrb[0].mxu0
    %v183 = vpop.f32.mrb[0].mxu0
    %v184 = vadd.f32 %v67, %v183
    %v185 = vpop.f32.mrb[0].mxu0
    %186 = vmatprep.mubr.bf16.mxu0 0
    %187 = vmatmul.mubr.bf16.gmra.mrb[0].mxu0 %v126
    %v188 = vpop.f32.mrb[0].mxu0
    %v189 = vadd.f32 %v67, %v188
    %v190 = vpop.f32.mrb[0].mxu0
    %v191 = vpop.f32.mrb[0].mxu0
    %v192 = vadd.f32 %v67, %v191
    %v193 = vpop.f32.mrb[0].mxu0
    %194 = vmatprep.mubr.bf16.mxu0 0
    %195 = vmatmul.mubr.bf16.gmra.mrb[0].mxu0 %v129
    %v196 = vpop.f32.mrb[0].mxu0
    %v197 = vadd.f32 %v67, %v196
    %v198 = vpop.f32.mrb[0].mxu0
    %v199 = vpop.f32.mrb[0].mxu0
    %v200 = vadd.f32 %v67, %v199
    %v201 = vpop.f32.mrb[0].mxu0
    %202 = vmatprep.mubr.bf16.mxu0 0
    %203 = vmatmul.mubr.bf16.gmra.mrb[0].mxu0 %v132
    %v204 = vpop.f32.mrb[0].mxu0
    %v205 = vadd.f32 %v67, %v204
    %v206 = vpop.f32.mrb[0].mxu0
    %v207 = vpop.f32.mrb[0].mxu0
    %v208 = vadd.f32 %v67, %v207
    %v209 = vpop.f32.mrb[0].mxu0
    %210 = vmatprep.mubr.bf16.mxu0 0
    %211 = vmatmul.mubr.bf16.gmra.mrb[0].mxu0 %v135
    %v212 = vpop.f32.mrb[0].mxu0
    %v213 = vadd.f32 %v67, %v212
    %v214 = vpop.f32.mrb[0].mxu0
    %v215 = vpop.f32.mrb[0].mxu0
    %v216 = vadd.f32 %v67, %v215
    %v217 = vpop.f32.mrb[0].mxu0
    %218 = vmatprep.mubr.bf16.mxu0 0
    %219 = vmatmul.mubr.bf16.gmra.mrb[0].mxu0 %v138
    %v220 = vpop.f32.mrb[0].mxu0
    %v221 = vadd.f32 %v67, %v220
    %v222 = vpop.f32.mrb[0].mxu0
    %v223 = vpop.f32.mrb[0].mxu0
    %v224 = vadd.f32 %v67, %v223
    %v225 = vpop.f32.mrb[0].mxu0
    %226 = vmatprep.mubr.bf16.mxu0 0
    %227 = vmatmul.mubr.bf16.gmra.mrb[0].mxu0 %v141
    %v228 = vpop.f32.mrb[0].mxu0
    %v229 = vadd.f32 %v67, %v228
    %v230 = vpop.f32.mrb[0].mxu0
    %v231 = vpop.f32.mrb[0].mxu0
    %v232 = vadd.f32 %v67, %v231
    %v233 = vpop.f32.mrb[0].mxu0
    %234 = vmatprep.mubr.bf16.mxu0 0
    %235 = vmatmul.mubr.bf16.gmra.mrb[0].mxu0 %v144
    %v236 = vpop.f32.mrb[0].mxu0
    %v237 = vadd.f32 %v67, %v236
    %v238 = vpop.f32.mrb[0].mxu0
    %v239 = vpop.f32.mrb[0].mxu0
    %v240 = vadd.f32 %v67, %v239
    %v241 = vpop.f32.mrb[0].mxu0
    %242 = vdwg.mxu0
    %v243 = vmax.f32 %v181, 0.0
    %v244 = vmax.f32 %v184, 0.0
    %v245 = vmax.f32 %v189, 0.0
    %v246 = vmax.f32 %v192, 0.0
    %v247 = vmax.f32 %v197, 0.0
    %v248 = vmax.f32 %v200, 0.0
    %v249 = vmax.f32 %v205, 0.0
    %v250 = vmax.f32 %v208, 0.0
    %v251 = vmax.f32 %v213, 0.0
    %v252 = vmax.f32 %v216, 0.0
    %v253 = vmax.f32 %v221, 0.0
    %v254 = vmax.f32 %v224, 0.0
    %v255 = vmax.f32 %v229, 0.0
    %v256 = vmax.f32 %v232, 0.0
    %v257 = vmax.f32 %v237, 0.0
    %v258 = vmax.f32 %v240, 0.0
    %v259 = vpack.c.bf16 %v244, %v243
    %v260 = vpack.c.bf16 %v246, %v245
    %v261 = vpack.c.bf16 %v248, %v247
    %v262 = vpack.c.bf16 %v250, %v249
    %v263 = vpack.c.bf16 %v252, %v251
    %v264 = vpack.c.bf16 %v254, %v253
    %v265 = vpack.c.bf16 %v256, %v255
    %v266 = vpack.c.bf16 %v258, %v257
    %v267 = vld [vmem:[%s3] sm:$0xf]
    %v268 = vld [vmem:[%s3 + $0x4] sm:$0xf]
    %v269 = vld [vmem:[%s3 + $0x8] sm:$0xf]
    %v270 = vld [vmem:[%s3 + $0xc] sm:$0xf]
    %v271 = vld [vmem:[%s3 + $0x10] sm:$0xf]
    %v272 = vld [vmem:[%s3 + $0x14] sm:$0xf]
    %v273 = vld [vmem:[%s3 + $0x18] sm:$0xf]
    %v274 = vld [vmem:[%s3 + $0x1c] sm:$0xf]
    %v275 = vld [vmem:[%s3 + $0x20] sm:$0xf]
    %v276 = vld [vmem:[%s3 + $0x24] sm:$0xf]
    %v277 = vld [vmem:[%s3 + $0x28] sm:$0xf]
    %v278 = vld [vmem:[%s3 + $0x2c] sm:$0xf]
    %v279 = vld [vmem:[%s3 + $0x30] sm:$0xf]
    %v280 = vld [vmem:[%s3 + $0x34] sm:$0xf]
    %v281 = vld [vmem:[%s3 + $0x38] sm:$0xf]
    %v282 = vld [vmem:[%s3 + $0x3c] sm:$0xf]
    %v283 = vld [vmem:[%s4] sm:$0x1]
    %v285 = vlaneseq
    %v286 = vshrl.u32 %v285, 7
    %v287 = vsub.s32 0, %v286
    %v288 = vrot.slane %v283, %v287
    %v306 = vunpack.c.l.b16 %v267
    %v307 = vunpack.c.l.b16 %v268
    %v308 = vunpack.c.l.b16 %v269
    %v309 = vunpack.c.l.b16 %v270
    %v310 = vunpack.c.l.b16 %v271
    %v311 = vunpack.c.l.b16 %v272
    %v312 = vunpack.c.l.b16 %v273
    %v313 = vunpack.c.l.b16 %v274
    %v314 = vunpack.c.l.b16 %v275
    %v315 = vunpack.c.l.b16 %v276
    %v316 = vunpack.c.l.b16 %v277
    %v317 = vunpack.c.l.b16 %v278
    %v318 = vunpack.c.l.b16 %v279
    %v319 = vunpack.c.l.b16 %v280
    %v320 = vunpack.c.l.b16 %v281
    %v321 = vunpack.c.l.b16 %v282
    %v322 = vpack.c.b16 %v307, %v306
    %v323 = vpack.c.b16 %v309, %v308
    %v324 = vpack.c.b16 %v311, %v310
    %v325 = vpack.c.b16 %v313, %v312
    %v326 = vpack.c.b16 %v315, %v314
    %v327 = vpack.c.b16 %v317, %v316
    %v328 = vpack.c.b16 %v319, %v318
    %v329 = vpack.c.b16 %v321, %v320
    %338 = vmatprep.subr.bf16.mxu0 0
    %339 = vmatpush1.bf16.msra.mxu0 %v322
    %340 = vmatprep.subr.bf16.mxu0 0
    %341 = vmatpush1.bf16.msra.mxu0 %v323
    %342 = vmatprep.subr.bf16.mxu0 0
    %343 = vmatpush1.bf16.msra.mxu0 %v324
    %344 = vmatprep.subr.bf16.mxu0 0
    %345 = vmatpush1.bf16.msra.mxu0 %v325
    %346 = vmatprep.subr.bf16.mxu0 0
    %347 = vmatpush1.bf16.msra.mxu0 %v326
    %348 = vmatprep.subr.bf16.mxu0 0
    %349 = vmatpush1.bf16.msra.mxu0 %v327
    %350 = vmatprep.subr.bf16.mxu0 0
    %351 = vmatpush1.bf16.msra.mxu0 %v328
    %352 = vmatprep.subr.bf16.mxu0 0
    %353 = vmatpush1.bf16.msra.mxu0 %v329
    %354 = vmatprep.subr.bf16.mxu0 0
    %355 = vmatpush1.bf16.msra.mxu0 0
    %356 = vmatprep.subr.bf16.mxu0 0
    %357 = vmatpush1.bf16.msra.mxu0 0
    %358 = vmatprep.subr.bf16.mxu0 0
    %359 = vmatpush1.bf16.msra.mxu0 0
    %360 = vmatprep.subr.bf16.mxu0 0
    %361 = vmatpush1.bf16.msra.mxu0 0
    %362 = vmatprep.subr.bf16.mxu0 0
    %363 = vmatpush1.bf16.msra.mxu0 0
    %364 = vmatprep.subr.bf16.mxu0 0
    %365 = vmatpush1.bf16.msra.mxu0 0
    %366 = vmatprep.subr.bf16.mxu0 0
    %367 = vmatpush1.bf16.msra.mxu0 0
    %368 = vmatprep.subr.bf16.mxu0 0
    %369 = vmatpush1.bf16.msra.mxu0 0
    %370 = vmatprep.mubr.bf16.mxu0 0
    %371 = vmatmul.mubr.bf16.gmra.mrb[0].mxu0 %v259
    %v372 = vpop.f32.mrb[0].mxu0
    %v373 = vadd.f32 %v288, %v372
    %v374 = vpop.f32.mrb[0].mxu0
    %v375 = vpop.f32.mrb[0].mxu0
    %v376 = vadd.f32 %v288, %v375
    %v377 = vpop.f32.mrb[0].mxu0
    %378 = vmatprep.mubr.bf16.mxu0 0
    %379 = vmatmul.mubr.bf16.gmra.mrb[0].mxu0 %v260
    %v380 = vpop.f32.mrb[0].mxu0
    %v381 = vadd.f32 %v288, %v380
    %v382 = vpop.f32.mrb[0].mxu0
    %v383 = vpop.f32.mrb[0].mxu0
    %v384 = vadd.f32 %v288, %v383
    %v385 = vpop.f32.mrb[0].mxu0
    %386 = vmatprep.mubr.bf16.mxu0 0
    %387 = vmatmul.mubr.bf16.gmra.mrb[0].mxu0 %v261
    %v388 = vpop.f32.mrb[0].mxu0
    %v389 = vadd.f32 %v288, %v388
    %v390 = vpop.f32.mrb[0].mxu0
    %v391 = vpop.f32.mrb[0].mxu0
    %v392 = vadd.f32 %v288, %v391
    %v393 = vpop.f32.mrb[0].mxu0
    %394 = vmatprep.mubr.bf16.mxu0 0
    %395 = vmatmul.mubr.bf16.gmra.mrb[0].mxu0 %v262
    %v396 = vpop.f32.mrb[0].mxu0
    %v397 = vadd.f32 %v288, %v396
    %v398 = vpop.f32.mrb[0].mxu0
    %v399 = vpop.f32.mrb[0].mxu0
    %v400 = vadd.f32 %v288, %v399
    %v401 = vpop.f32.mrb[0].mxu0
    %402 = vmatprep.mubr.bf16.mxu0 0
    %403 = vmatmul.mubr.bf16.gmra.mrb[0].mxu0 %v263
    %v404 = vpop.f32.mrb[0].mxu0
    %v405 = vadd.f32 %v288, %v404
    %v406 = vpop.f32.mrb[0].mxu0
    %v407 = vpop.f32.mrb[0].mxu0
    %v408 = vadd.f32 %v288, %v407
    %v409 = vpop.f32.mrb[0].mxu0
    %410 = vmatprep.mubr.bf16.mxu0 0
    %411 = vmatmul.mubr.bf16.gmra.mrb[0].mxu0 %v264
    %v412 = vpop.f32.mrb[0].mxu0
    %v413 = vadd.f32 %v288, %v412
    %v414 = vpop.f32.mrb[0].mxu0
    %v415 = vpop.f32.mrb[0].mxu0
    %v416 = vadd.f32 %v288, %v415
    %v417 = vpop.f32.mrb[0].mxu0
    %418 = vmatprep.mubr.bf16.mxu0 0
    %419 = vmatmul.mubr.bf16.gmra.mrb[0].mxu0 %v265
    %v420 = vpop.f32.mrb[0].mxu0
    %v421 = vadd.f32 %v288, %v420
    %v422 = vpop.f32.mrb[0].mxu0
    %v423 = vpop.f32.mrb[0].mxu0
    %v424 = vadd.f32 %v288, %v423
    %v425 = vpop.f32.mrb[0].mxu0
    %426 = vmatprep.mubr.bf16.mxu0 0
    %427 = vmatmul.mubr.bf16.gmra.mrb[0].mxu0 %v266
    %v428 = vpop.f32.mrb[0].mxu0
    %v429 = vadd.f32 %v288, %v428
    %v430 = vpop.f32.mrb[0].mxu0
    %v431 = vpop.f32.mrb[0].mxu0
    %v432 = vadd.f32 %v288, %v431
    %v433 = vpop.f32.mrb[0].mxu0
    %434 = vdwg.mxu0
    %v435 = vmax.f32 %v373, 0.0
    %v436 = vmax.f32 %v376, 0.0
    %v437 = vmax.f32 %v381, 0.0
    %v438 = vmax.f32 %v384, 0.0
    %v439 = vmax.f32 %v389, 0.0
    %v440 = vmax.f32 %v392, 0.0
    %v441 = vmax.f32 %v397, 0.0
    %v442 = vmax.f32 %v400, 0.0
    %v443 = vmax.f32 %v405, 0.0
    %v444 = vmax.f32 %v408, 0.0
    %v445 = vmax.f32 %v413, 0.0
    %v446 = vmax.f32 %v416, 0.0
    %v447 = vmax.f32 %v421, 0.0
    %v448 = vmax.f32 %v424, 0.0
    %v449 = vmax.f32 %v429, 0.0
    %v450 = vmax.f32 %v432, 0.0
    %v451 = vpack.c.bf16 %v436, %v435
    %v452 = vpack.c.bf16 %v438, %v437
    %v453 = vpack.c.bf16 %v440, %v439
    %v454 = vpack.c.bf16 %v442, %v441
    %v455 = vpack.c.bf16 %v444, %v443
    %v456 = vpack.c.bf16 %v446, %v445
    %v457 = vpack.c.bf16 %v448, %v447
    %v458 = vpack.c.bf16 %v450, %v449
    %v459 = vld [vmem:[#allocation2] sm:$0xf]
    %v460 = vld [vmem:[#allocation2 + $0x4] sm:$0xf]
    %v461 = vld [vmem:[#allocation2 + $0x8] sm:$0xf]
    %v462 = vld [vmem:[#allocation2 + $0xc] sm:$0xf]
    %v463 = vld [vmem:[#allocation2 + $0x10] sm:$0xf]
    %v464 = vld [vmem:[#allocation2 + $0x14] sm:$0xf]
    %v465 = vld [vmem:[#allocation2 + $0x18] sm:$0xf]
    %v466 = vld [vmem:[#allocation2 + $0x1c] sm:$0xf]
    %v467 = vld [vmem:[#allocation2 + $0x20] sm:$0xf]
    %v468 = vld [vmem:[#allocation2 + $0x24] sm:$0xf]
    %v469 = vld [vmem:[#allocation2 + $0x28] sm:$0xf]
    %v470 = vld [vmem:[#allocation2 + $0x2c] sm:$0xf]
    %v471 = vld [vmem:[#allocation2 + $0x30] sm:$0xf]
    %v472 = vld [vmem:[#allocation2 + $0x34] sm:$0xf]
    %v473 = vld [vmem:[#allocation2 + $0x38] sm:$0xf]
    %v474 = vld [vmem:[#allocation2 + $0x3c] sm:$0xf]
    %v475 = vld [vmem:[%s6] sm:$0x1]
    %v477 = vlaneseq
    %v478 = vshrl.u32 %v477, 7
    %v479 = vsub.s32 0, %v478
    %v480 = vrot.slane %v475, %v479
    %v498 = vunpack.c.l.b16 %v459
    %v499 = vunpack.c.l.b16 %v460
    %v500 = vunpack.c.l.b16 %v461
    %v501 = vunpack.c.l.b16 %v462
    %v502 = vunpack.c.l.b16 %v463
    %v503 = vunpack.c.l.b16 %v464
    %v504 = vunpack.c.l.b16 %v465
    %v505 = vunpack.c.l.b16 %v466
    %v506 = vunpack.c.l.b16 %v467
    %v507 = vunpack.c.l.b16 %v468
    %v508 = vunpack.c.l.b16 %v469
    %v509 = vunpack.c.l.b16 %v470
    %v510 = vunpack.c.l.b16 %v471
    %v511 = vunpack.c.l.b16 %v472
    %v512 = vunpack.c.l.b16 %v473
    %v513 = vunpack.c.l.b16 %v474
    %v514 = vpack.c.b16 %v499, %v498
    %v515 = vpack.c.b16 %v501, %v500
    %v516 = vpack.c.b16 %v503, %v502
    %v517 = vpack.c.b16 %v505, %v504
    %v518 = vpack.c.b16 %v507, %v506
    %v519 = vpack.c.b16 %v509, %v508
    %v520 = vpack.c.b16 %v511, %v510
    %v521 = vpack.c.b16 %v513, %v512
    %530 = vmatprep.subr.bf16.mxu0 0
    %531 = vmatpush1.bf16.msra.mxu0 %v514
    %532 = vmatprep.subr.bf16.mxu0 0
    %533 = vmatpush1.bf16.msra.mxu0 %v515
    %534 = vmatprep.subr.bf16.mxu0 0
    %535 = vmatpush1.bf16.msra.mxu0 %v516
    %536 = vmatprep.subr.bf16.mxu0 0
    %537 = vmatpush1.bf16.msra.mxu0 %v517
    %538 = vmatprep.subr.bf16.mxu0 0
    %539 = vmatpush1.bf16.msra.mxu0 %v518
    %540 = vmatprep.subr.bf16.mxu0 0
    %541 = vmatpush1.bf16.msra.mxu0 %v519
    %542 = vmatprep.subr.bf16.mxu0 0
    %543 = vmatpush1.bf16.msra.mxu0 %v520
    %544 = vmatprep.subr.bf16.mxu0 0
    %545 = vmatpush1.bf16.msra.mxu0 %v521
    %546 = vmatprep.subr.bf16.mxu0 0
    %547 = vmatpush1.bf16.msra.mxu0 0
    %548 = vmatprep.subr.bf16.mxu0 0
    %549 = vmatpush1.bf16.msra.mxu0 0
    %550 = vmatprep.subr.bf16.mxu0 0
    %551 = vmatpush1.bf16.msra.mxu0 0
    %552 = vmatprep.subr.bf16.mxu0 0
    %553 = vmatpush1.bf16.msra.mxu0 0
    %554 = vmatprep.subr.bf16.mxu0 0
    %555 = vmatpush1.bf16.msra.mxu0 0
    %556 = vmatprep.subr.bf16.mxu0 0
    %557 = vmatpush1.bf16.msra.mxu0 0
    %558 = vmatprep.subr.bf16.mxu0 0
    %559 = vmatpush1.bf16.msra.mxu0 0
    %560 = vmatprep.subr.bf16.mxu0 0
    %561 = vmatpush1.bf16.msra.mxu0 0
    %562 = vmatprep.mubr.bf16.mxu0 0
    %563 = vmatmul.mubr.bf16.gmra.mrb[0].mxu0 %v451
    %v564 = vpop.f32.mrb[0].mxu0
    %v565 = vadd.f32 %v480, %v564
    %v566 = vpop.f32.mrb[0].mxu0
    %v567 = vpop.f32.mrb[0].mxu0
    %v568 = vadd.f32 %v480, %v567
    %v569 = vpop.f32.mrb[0].mxu0
    %570 = vmatprep.mubr.bf16.mxu0 0
    %571 = vmatmul.mubr.bf16.gmra.mrb[0].mxu0 %v452
    %v572 = vpop.f32.mrb[0].mxu0
    %v573 = vadd.f32 %v480, %v572
    %v574 = vpop.f32.mrb[0].mxu0
    %v575 = vpop.f32.mrb[0].mxu0
    %v576 = vadd.f32 %v480, %v575
    %v577 = vpop.f32.mrb[0].mxu0
    %578 = vmatprep.mubr.bf16.mxu0 0
    %579 = vmatmul.mubr.bf16.gmra.mrb[0].mxu0 %v453
    %v580 = vpop.f32.mrb[0].mxu0
    %v581 = vadd.f32 %v480, %v580
    %v582 = vpop.f32.mrb[0].mxu0
    %v583 = vpop.f32.mrb[0].mxu0
    %v584 = vadd.f32 %v480, %v583
    %v585 = vpop.f32.mrb[0].mxu0
    %586 = vmatprep.mubr.bf16.mxu0 0
    %587 = vmatmul.mubr.bf16.gmra.mrb[0].mxu0 %v454
    %v588 = vpop.f32.mrb[0].mxu0
    %v589 = vadd.f32 %v480, %v588
    %v590 = vpop.f32.mrb[0].mxu0
    %v591 = vpop.f32.mrb[0].mxu0
    %v592 = vadd.f32 %v480, %v591
    %v593 = vpop.f32.mrb[0].mxu0
    %594 = vmatprep.mubr.bf16.mxu0 0
    %595 = vmatmul.mubr.bf16.gmra.mrb[0].mxu0 %v455
    %v596 = vpop.f32.mrb[0].mxu0
    %v597 = vadd.f32 %v480, %v596
    %v598 = vpop.f32.mrb[0].mxu0
    %v599 = vpop.f32.mrb[0].mxu0
    %v600 = vadd.f32 %v480, %v599
    %v601 = vpop.f32.mrb[0].mxu0
    %602 = vmatprep.mubr.bf16.mxu0 0
    %603 = vmatmul.mubr.bf16.gmra.mrb[0].mxu0 %v456
    %v604 = vpop.f32.mrb[0].mxu0
    %v605 = vadd.f32 %v480, %v604
    %v606 = vpop.f32.mrb[0].mxu0
    %v607 = vpop.f32.mrb[0].mxu0
    %v608 = vadd.f32 %v480, %v607
    %v609 = vpop.f32.mrb[0].mxu0
    %610 = vmatprep.mubr.bf16.mxu0 0
    %611 = vmatmul.mubr.bf16.gmra.mrb[0].mxu0 %v457
    %v612 = vpop.f32.mrb[0].mxu0
    %v613 = vadd.f32 %v480, %v612
    %v614 = vpop.f32.mrb[0].mxu0
    %v615 = vpop.f32.mrb[0].mxu0
    %v616 = vadd.f32 %v480, %v615
    %v617 = vpop.f32.mrb[0].mxu0
    %618 = vmatprep.mubr.bf16.mxu0 0
    %619 = vmatmul.mubr.bf16.gmra.mrb[0].mxu0 %v458
    %v620 = vpop.f32.mrb[0].mxu0
    %v621 = vadd.f32 %v480, %v620
    %v622 = vpop.f32.mrb[0].mxu0
    %v623 = vpop.f32.mrb[0].mxu0
    %v624 = vadd.f32 %v480, %v623
    %v625 = vpop.f32.mrb[0].mxu0
    %626 = vdwg.mxu0
    %627 = vst [vmem:[#allocation5] sm:$0xff] %v565
    %628 = vst [vmem:[#allocation5 + $0x8] sm:$0xff] %v568
    %629 = vst [vmem:[#allocation5 + $0x10] sm:$0xff] %v573
    %630 = vst [vmem:[#allocation5 + $0x18] sm:$0xff] %v576
    %631 = vst [vmem:[#allocation5 + $0x20] sm:$0xff] %v581
    %632 = vst [vmem:[#allocation5 + $0x28] sm:$0xff] %v584
    %633 = vst [vmem:[#allocation5 + $0x30] sm:$0xff] %v589
    %634 = vst [vmem:[#allocation5 + $0x38] sm:$0xff] %v592
    %635 = vst [vmem:[#allocation5 + $0x40] sm:$0xff] %v597
    %636 = vst [vmem:[#allocation5 + $0x48] sm:$0xff] %v600
    %637 = vst [vmem:[#allocation5 + $0x50] sm:$0xff] %v605
    %638 = vst [vmem:[#allocation5 + $0x58] sm:$0xff] %v608
    %639 = vst [vmem:[#allocation5 + $0x60] sm:$0xff] %v613
    %640 = vst [vmem:[#allocation5 + $0x68] sm:$0xff] %v616
    %641 = vst [vmem:[#allocation5 + $0x70] sm:$0xff] %v621
    %642 = vst [vmem:[#allocation5 + $0x78] sm:$0xff] %v624
    // Predicated region
    $region34: #{tpu_custom_call.1} parent=1 // pred_check
      _
    $region35: #{tpu_custom_call.1} parent=1 // pred_check_branch
      %644 = sbr.rel (0) target = $region37
    $region36: #{tpu_custom_call.1} parent=1 // pred_region
      %s646 = ssub.s32 2048, 2048
      %647 = vsyncadd [#allocation4], %s646
      %s648 = sshll.u32 [#allocation5], 4
      %s649 = int_to_ptr.vmem [resolvable:$true] %s648
      %654 = dma.vmem_to_hbm [thread:$0]  %s649, 2048, %s7, [#allocation4], 128, 128, 8
    $region37: #{tpu_custom_call.1} parent=1 // pred_fallthru
      _
    // Predicated region
    $region38: #{tpu_custom_call.1} parent=1 // pred_check
      _
    $region39: #{tpu_custom_call.1} parent=1 // pred_check_branch
      %656 = sbr.rel (0) target = $region41
    $region40: #{tpu_custom_call.1} parent=1 // pred_region
      %657 = dma.done [#allocation4], 2048
    $region41: #{tpu_custom_call.1} parent=1 // pred_fallthru
      _
    %658 = vsyncpa [#allocation3], 1
    %659 = vsyncpa [#allocation4], 1

</llo_original>
